<compile_context>
chip_gen: v6e
topology: v6e:2x2x1
jax: 0.10.0
libtpu: 0.0.40
codegen_flags: <defaults>
</compile_context>

<pallas_src>
import functools

import numpy as np
import jax
import jax.numpy as jnp
from jax.experimental import pallas as pl
from jax.experimental.pallas import tpu as pltpu


# -----------------------------------------------------------------------------
# BlockSpec helpers
# -----------------------------------------------------------------------------
def _full_spec(shape):
    zeros = (0,) * len(shape)
    return pl.BlockSpec(tuple(shape), lambda c: zeros)


def _chan_spec(shape):
    rest = tuple(shape[1:])
    zeros = (0,) * len(rest)
    return pl.BlockSpec((1, *rest), lambda c: (c, *zeros))


def _gated(y, g, b):
    # (gamma + (1 - gamma) * sigmoid(beta * y)) * y
    return (g + (1.0 - g) * jax.nn.sigmoid(b * y)) * y


def _layernorm(v, g, b, eps=1e-5):
    mu = jnp.mean(v, axis=-1, keepdims=True)
    var = jnp.mean(jnp.square(v - mu), axis=-1, keepdims=True)
    return (v - mu) * jax.lax.rsqrt(var + eps) * g + b


# -----------------------------------------------------------------------------
# Single fused kernel: input linear -> MLP resnet blocks -> embedding linear
#   -> transformer encoder stack (+ gated activations) -> output linear.
# grid=(C,) with C = num_zbins (=1); everything stays in VMEM/vregs.
# -----------------------------------------------------------------------------
def _fused_forward_kernel(*refs, num_mlp_blocks, num_layers, use_skip,
                          num_tf_blocks, split_size, split_dim):
    o_ref = refs[-1]
    it = iter(refs[:-1])
    S, D = split_size, split_dim

    # ---- per-channel input linear ------------------------------------------
    x_ref = next(it)
    h = x_ref[...]                                           # (B, in_dim)
    B = h.shape[0]
    w_ref = next(it)
    b_ref = next(it)
    h = jnp.dot(h, w_ref[0], preferred_element_type=jnp.float32) + b_ref[0]

    # ---- parallel-resnet MLP blocks ------------------------------------------
    for _ in range(num_mlp_blocks):
        lw_ref = next(it)
        lb_ref = next(it)
        ag_ref = next(it)
        ab_ref = next(it)
        y = h
        for l in range(num_layers):
            y = _gated(
                jnp.dot(y, lw_ref[0, l], preferred_element_type=jnp.float32)
                + lb_ref[0, l],
                ag_ref[l], ab_ref[l])
        if use_skip:
            sw_ref = next(it)
            sb_ref = next(it)
            skip = (jnp.dot(h, sw_ref[0], preferred_element_type=jnp.float32)
                    + sb_ref[0])
        ow_ref = next(it)
        ob_ref = next(it)
        og_ref = next(it)
        obt_ref = next(it)
        z = jnp.dot(y, ow_ref[0], preferred_element_type=jnp.float32) + ob_ref[0]
        if use_skip:
            z = z + skip
        h = _gated(z, og_ref[...], obt_ref[...])

    # ---- embedding linear + in-kernel (B, E) -> (B, S, D) view --------------
    ew_ref = next(it)
    eb_ref = next(it)
    e = jnp.dot(h, ew_ref[0], preferred_element_type=jnp.float32) + eb_ref[0]
    x3 = e.reshape(B, S, D)                                  # value reshape

    # ---- transformer encoder blocks + gated activation -----------------------
    wqkv_ref = next(it)
    bqkv_ref = next(it)
    wo_ref = next(it)
    bo_ref = next(it)
    ln1g_ref = next(it)
    ln1b_ref = next(it)
    w1_ref = next(it)
    b1_ref = next(it)
    w2_ref = next(it)
    b2_ref = next(it)
    ln2g_ref = next(it)
    ln2b_ref = next(it)
    tag_ref = next(it)
    tab_ref = next(it)
    fow_ref = next(it)
    fob_ref = next(it)

    scale = 1.0 / (float(D) ** 0.5)
    for t in range(num_tf_blocks):
        q = (jnp.einsum('bsd,de->bse', x3, wqkv_ref[0, t, 0],
                        preferred_element_type=jnp.float32) + bqkv_ref[0, t, 0])
        k = (jnp.einsum('bsd,de->bse', x3, wqkv_ref[0, t, 1],
                        preferred_element_type=jnp.float32) + bqkv_ref[0, t, 1])
        v = (jnp.einsum('bsd,de->bse', x3, wqkv_ref[0, t, 2],
                        preferred_element_type=jnp.float32) + bqkv_ref[0, t, 2])

        sc = jnp.einsum('bqd,bkd->bqk', q, k,
                        preferred_element_type=jnp.float32) * scale
        sc = sc - jnp.max(sc, axis=-1, keepdims=True)
        p = jnp.exp(sc)
        # EUP reciprocal: separate VLIW slot, effectively free here.
        p = p * pl.reciprocal(jnp.sum(p, axis=-1, keepdims=True), approx=True)

        attn = jnp.einsum('bqk,bkd->bqd', p, v,
                          preferred_element_type=jnp.float32)
        attn = (jnp.einsum('bsd,de->bse', attn, wo_ref[0, t],
                           preferred_element_type=jnp.float32) + bo_ref[0, t])

        h1 = _layernorm(x3 + attn, ln1g_ref[0, t], ln1b_ref[0, t])

        ff = jnp.maximum(
            jnp.einsum('bsd,dh->bsh', h1, w1_ref[0, t],
                       preferred_element_type=jnp.float32) + b1_ref[0, t], 0.0)
        ff = (jnp.einsum('bsh,hd->bsd', ff, w2_ref[0, t],
                         preferred_element_type=jnp.float32) + b2_ref[0, t])

        h2 = _layernorm(h1 + ff, ln2g_ref[0, t], ln2b_ref[0, t])

        # gated activation over the full embedding (params viewed as (S, D))
        x3 = _gated(h2, tag_ref[0, t], tab_ref[0, t])

    # ---- output linear: single K = S*D contraction; columns of fow/fob are
    #      already in the final (spectra, k, ell) order (folded at trace time).
    xf = x3.reshape(B, S * D)                                # value reshape
    yout = (jnp.dot(xf, fow_ref[0], preferred_element_type=jnp.float32)
            + fob_ref[0])
    o_ref[0] = yout.astype(o_ref.dtype)                      # (B, out_dim)


# -----------------------------------------------------------------------------
# Model forward: exactly ONE pallas_call.
# -----------------------------------------------------------------------------
def transformer_forward(params, cfg, input_params):
    B = input_params.shape[0]
    C = 1                       # num_zbins (hard-coded to 1 in the module)
    num_spectra = 1
    n_ell, n_k = cfg['num_ells'], cfg['num_kbins']
    S, D = cfg['split_size'], cfg['split_dim']
    out_dim = num_spectra * n_ell * n_k

    # Fold the PyTorch tail (view -> permute(ell,k)->(k,ell) -> reshape) into
    # the output weight/bias column order.  perm[j_final] = j_pre.
    perm = np.arange(out_dim).reshape(num_spectra, n_ell, n_k)
    perm = perm.transpose(0, 2, 1).reshape(-1)
    out_w = params['out_w'][..., perm]
    out_b = params['out_b'][..., perm]

    args, specs = [], []

    def chan(a):
        args.append(a)
        specs.append(_chan_spec(a.shape))

    def full(a):
        args.append(a)
        specs.append(_full_spec(a.shape))

    full(input_params)
    chan(params['input_w'])
    chan(params['input_b'])
    for bp in params['mlp_blocks']:
        chan(bp['lin_w'])
        chan(bp['lin_b'])
        full(bp['act_g'])
        full(bp['act_b'])
        if cfg['use_skip_connection']:
            chan(bp['skip_w'])
            chan(bp['skip_b'])
        chan(bp['out_w'])
        chan(bp['out_b'])
        full(bp['out_act_g'])
        full(bp['out_act_b'])
    chan(params['emb_w'])
    chan(params['emb_b'])
    tp = params['transformer']
    for name in ('wqkv', 'bqkv', 'wo', 'bo', 'ln1_g', 'ln1_b',
                 'w1', 'b1', 'w2', 'b2', 'ln2_g', 'ln2_b', 'act_g', 'act_b'):
        chan(tp[name])
    chan(out_w)
    chan(out_b)

    out = pl.pallas_call(
        functools.partial(
            _fused_forward_kernel,
            num_mlp_blocks=cfg['num_mlp_blocks'],
            num_layers=cfg['num_block_layers'],
            use_skip=cfg['use_skip_connection'],
            num_tf_blocks=cfg['num_transformer_blocks'],
            split_size=S, split_dim=D),
        out_shape=jax.ShapeDtypeStruct((C, B, out_dim), jnp.float32),
        grid=(C,),
        in_specs=specs,
        out_specs=pl.BlockSpec((1, B, out_dim), lambda c: (c, 0, 0)),
        compiler_params=pltpu.CompilerParams(
            dimension_semantics=("parallel",)),
    )(*args)

    # (C, B, out_dim) -> (B, C, out_dim).  Degenerate transpose (C == 1) that
    # XLA folds to a bitcast.  Columns are already in final (s, k, ell) order,
    # so the original view/permute/reshape chain is gone.
    return jnp.swapaxes(out, 0, 1)


# -----------------------------------------------------------------------------
# Deterministic parameter construction (stacked layouts for the fused kernel)
# -----------------------------------------------------------------------------
def init_params(key, cfg):
    C = 1
    in_dim = (cfg['num_cosmo_params']
              + C * cfg['num_samples'] * cfg['num_bias_params'])
    out_dim = 1 * cfg['num_ells'] * cfg['num_kbins']
    S, D = cfg['split_size'], cfg['split_dim']
    E = S * D
    H = 2 * D                  # feedforward hidden width (assumption)
    L = cfg['num_block_layers']
    NT = cfg['num_transformer_blocks']
    keys = iter(jax.random.split(key, 1024))

    def w_init(shape, fan_in):
        return (jax.random.normal(next(keys), shape, jnp.float32)
                / jnp.sqrt(jnp.float32(fan_in)))

    def act(shape):
        return 0.1 * jax.random.normal(next(keys), shape, jnp.float32)

    params = {}
    params['input_w'] = w_init((C, in_dim, cfg['mlp_dims'][0]), in_dim)
    params['input_b'] = jnp.zeros((C, 1, cfg['mlp_dims'][0]), jnp.float32)

    params['mlp_blocks'] = []
    for i in range(cfg['num_mlp_blocks']):
        din, dout = cfg['mlp_dims'][i], cfg['mlp_dims'][i + 1]
        bp = {}
        bp['lin_w'] = w_init((C, L, din, din), din)
        bp['lin_b'] = jnp.zeros((C, L, 1, din), jnp.float32)
        bp['act_g'] = act((L, 1, din))
        bp['act_b'] = act((L, 1, din))
        bp['skip_w'] = w_init((C, din, dout), din)
        bp['skip_b'] = jnp.zeros((C, 1, dout), jnp.float32)
        bp['out_w'] = w_init((C, din, dout), din)
        bp['out_b'] = jnp.zeros((C, 1, dout), jnp.float32)
        bp['out_act_g'] = act((1, dout))
        bp['out_act_b'] = act((1, dout))
        params['mlp_blocks'].append(bp)

    params['emb_w'] = w_init((C, cfg['mlp_dims'][-1], E), cfg['mlp_dims'][-1])
    params['emb_b'] = jnp.zeros((C, 1, E), jnp.float32)

    tp = {}
    tp['wqkv'] = w_init((C, NT, 3, D, D), D)
    tp['bqkv'] = jnp.zeros((C, NT, 3, 1, D), jnp.float32)
    tp['wo'] = w_init((C, NT, D, D), D)
    tp['bo'] = jnp.zeros((C, NT, 1, D), jnp.float32)
    tp['ln1_g'] = jnp.ones((C, NT, 1, D), jnp.float32)
    tp['ln1_b'] = jnp.zeros((C, NT, 1, D), jnp.float32)
    tp['w1'] = w_init((C, NT, D, H), D)
    tp['b1'] = jnp.zeros((C, NT, 1, H), jnp.float32)
    tp['w2'] = w_init((C, NT, H, D), H)
    tp['b2'] = jnp.zeros((C, NT, 1, D), jnp.float32)
    tp['ln2_g'] = jnp.ones((C, NT, 1, D), jnp.float32)
    tp['ln2_b'] = jnp.zeros((C, NT, 1, D), jnp.float32)
    tp['act_g'] = act((C, NT, S, D))
    tp['act_b'] = act((C, NT, S, D))
    params['transformer'] = tp

    params['out_w'] = w_init((C, E, out_dim), E)
    params['out_b'] = jnp.zeros((C, 1, out_dim), jnp.float32)
    return params


if __name__ == "__main__":
    cfg = dict(
        num_cosmo_params=4, num_samples=2, num_bias_params=2,
        num_ells=2, num_kbins=8,
        mlp_dims=[32, 32], num_mlp_blocks=1, num_block_layers=1,
        use_skip_connection=True,
        split_dim=16, split_size=4,          # embedding_dim = 64
        num_transformer_blocks=1,
    )
    key = jax.random.PRNGKey(0)
    pkey, xkey = jax.random.split(key)
    params = init_params(pkey, cfg)

    B = 2
    in_dim = (cfg['num_cosmo_params']
              + 1 * cfg['num_samples'] * cfg['num_bias_params'])   # = 8
    input_params = jax.random.normal(xkey, (B, in_dim), jnp.float32)

    @jax.jit
    def fwd(p, x):
        return transformer_forward(p, cfg, x)

    out = fwd(params, input_params)
    out = jax.block_until_ready(out)

    expected = (B, 1, 1 * cfg['num_ells'] * cfg['num_kbins'])
    assert out.shape == expected, (out.shape, expected)
    assert bool(jnp.all(jnp.isfinite(out)))
    print("KERNEL_OK")
</pallas_src>

<mosaic_0001>
module attributes {stable_mosaic.version = 11 : i64} {
  func.func @_fused_forward_kernel(%arg0: i32, %arg1: memref<2x8xf32, #tpu.memory_space<vmem>>, %arg2: memref<1x8x32xf32, #tpu.memory_space<vmem>>, %arg3: memref<1x1x32xf32, #tpu.memory_space<vmem>>, %arg4: memref<1x1x32x32xf32, #tpu.memory_space<vmem>>, %arg5: memref<1x1x1x32xf32, #tpu.memory_space<vmem>>, %arg6: memref<1x1x32xf32, #tpu.memory_space<vmem>>, %arg7: memref<1x1x32xf32, #tpu.memory_space<vmem>>, %arg8: memref<1x32x32xf32, #tpu.memory_space<vmem>>, %arg9: memref<1x1x32xf32, #tpu.memory_space<vmem>>, %arg10: memref<1x32x32xf32, #tpu.memory_space<vmem>>, %arg11: memref<1x1x32xf32, #tpu.memory_space<vmem>>, %arg12: memref<1x32xf32, #tpu.memory_space<vmem>>, %arg13: memref<1x32xf32, #tpu.memory_space<vmem>>, %arg14: memref<1x32x64xf32, #tpu.memory_space<vmem>>, %arg15: memref<1x1x64xf32, #tpu.memory_space<vmem>>, %arg16: memref<1x1x3x16x16xf32, #tpu.memory_space<vmem>>, %arg17: memref<1x1x3x1x16xf32, #tpu.memory_space<vmem>>, %arg18: memref<1x1x16x16xf32, #tpu.memory_space<vmem>>, %arg19: memref<1x1x1x16xf32, #tpu.memory_space<vmem>>, %arg20: memref<1x1x1x16xf32, #tpu.memory_space<vmem>>, %arg21: memref<1x1x1x16xf32, #tpu.memory_space<vmem>>, %arg22: memref<1x1x16x32xf32, #tpu.memory_space<vmem>>, %arg23: memref<1x1x1x32xf32, #tpu.memory_space<vmem>>, %arg24: memref<1x1x32x16xf32, #tpu.memory_space<vmem>>, %arg25: memref<1x1x1x16xf32, #tpu.memory_space<vmem>>, %arg26: memref<1x1x1x16xf32, #tpu.memory_space<vmem>>, %arg27: memref<1x1x1x16xf32, #tpu.memory_space<vmem>>, %arg28: memref<1x1x4x16xf32, #tpu.memory_space<vmem>>, %arg29: memref<1x1x4x16xf32, #tpu.memory_space<vmem>>, %arg30: memref<1x64x16xf32, #tpu.memory_space<vmem>>, %arg31: memref<1x1x16xf32, #tpu.memory_space<vmem>>, %arg32: memref<1x2x16xf32, #tpu.memory_space<vmem>>) attributes {dimension_semantics = [#tpu.dimension_semantics<parallel>], iteration_bounds = array<i64: 1>, scalar_prefetch = 0 : i64, scratch_operands = 0 : i64, tpu.core_type = #tpu.core_type<tc>, window_params = [{pipeline_mode = #tpu.pipeline_mode<synchronous>, transform_indices = @transform_0, window_bounds = array<i64: 2, 8>}, {transform_indices = @transform_1, window_bounds = array<i64: 1, 8, 32>}, {transform_indices = @transform_2, window_bounds = array<i64: 1, 1, 32>}, {transform_indices = @transform_3, window_bounds = array<i64: 1, 1, 32, 32>}, {transform_indices = @transform_4, window_bounds = array<i64: 1, 1, 1, 32>}, {pipeline_mode = #tpu.pipeline_mode<synchronous>, transform_indices = @transform_5, window_bounds = array<i64: 1, 1, 32>}, {pipeline_mode = #tpu.pipeline_mode<synchronous>, transform_indices = @transform_6, window_bounds = array<i64: 1, 1, 32>}, {transform_indices = @transform_7, window_bounds = array<i64: 1, 32, 32>}, {transform_indices = @transform_8, window_bounds = array<i64: 1, 1, 32>}, {transform_indices = @transform_9, window_bounds = array<i64: 1, 32, 32>}, {transform_indices = @transform_10, window_bounds = array<i64: 1, 1, 32>}, {pipeline_mode = #tpu.pipeline_mode<synchronous>, transform_indices = @transform_11, window_bounds = array<i64: 1, 32>}, {pipeline_mode = #tpu.pipeline_mode<synchronous>, transform_indices = @transform_12, window_bounds = array<i64: 1, 32>}, {transform_indices = @transform_13, window_bounds = array<i64: 1, 32, 64>}, {transform_indices = @transform_14, window_bounds = array<i64: 1, 1, 64>}, {transform_indices = @transform_15, window_bounds = array<i64: 1, 1, 3, 16, 16>}, {transform_indices = @transform_16, window_bounds = array<i64: 1, 1, 3, 1, 16>}, {transform_indices = @transform_17, window_bounds = array<i64: 1, 1, 16, 16>}, {transform_indices = @transform_18, window_bounds = array<i64: 1, 1, 1, 16>}, {transform_indices = @transform_19, window_bounds = array<i64: 1, 1, 1, 16>}, {transform_indices = @transform_20, window_bounds = array<i64: 1, 1, 1, 16>}, {transform_indices = @transform_21, window_bounds = array<i64: 1, 1, 16, 32>}, {transform_indices = @transform_22, window_bounds = array<i64: 1, 1, 1, 32>}, {transform_indices = @transform_23, window_bounds = array<i64: 1, 1, 32, 16>}, {transform_indices = @transform_24, window_bounds = array<i64: 1, 1, 1, 16>}, {transform_indices = @transform_25, window_bounds = array<i64: 1, 1, 1, 16>}, {transform_indices = @transform_26, window_bounds = array<i64: 1, 1, 1, 16>}, {transform_indices = @transform_27, window_bounds = array<i64: 1, 1, 4, 16>}, {transform_indices = @transform_28, window_bounds = array<i64: 1, 1, 4, 16>}, {transform_indices = @transform_29, window_bounds = array<i64: 1, 64, 16>}, {transform_indices = @transform_30, window_bounds = array<i64: 1, 1, 16>}, {transform_indices = @transform_31, window_bounds = array<i64: 1, 2, 16>}]} {
    %c0 = arith.constant 0 : index
    %c0_0 = arith.constant 0 : index
    %0 = vector.load %arg1[%c0, %c0_0] : memref<2x8xf32, #tpu.memory_space<vmem>>, vector<2x8xf32>
    %c0_1 = arith.constant 0 : index
    %c0_2 = arith.constant 0 : index
    %c0_3 = arith.constant 0 : index
    %1 = vector.load %arg2[%c0_1, %c0_2, %c0_3] : memref<1x8x32xf32, #tpu.memory_space<vmem>>, vector<1x8x32xf32>
    %2 = vector.shape_cast %1 : vector<1x8x32xf32> to vector<8x32xf32>
    %cst = arith.constant dense<0.000000e+00> : vector<2x32xf32>
    %3 = tpu.matmul %0, %2, %cst {dimension_numbers = #tpu.dot_dimension_numbers<[1], [0], [0], [1], [0, 0, 1, 1], [], []>} : vector<2x8xf32>, vector<8x32xf32>, vector<2x32xf32> -> vector<2x32xf32>
    %c0_4 = arith.constant 0 : index
    %c0_5 = arith.constant 0 : index
    %c0_6 = arith.constant 0 : index
    %4 = vector.load %arg3[%c0_4, %c0_5, %c0_6] : memref<1x1x32xf32, #tpu.memory_space<vmem>>, vector<1x1x32xf32>
    %5 = vector.shape_cast %4 : vector<1x1x32xf32> to vector<1x32xf32>
    %6 = vector.broadcast %5 : vector<1x32xf32> to vector<2x32xf32>
    %7 = arith.addf %3, %6 : vector<2x32xf32>
    %c0_7 = arith.constant 0 : index
    %c0_8 = arith.constant 0 : index
    %c0_9 = arith.constant 0 : index
    %c0_10 = arith.constant 0 : index
    %8 = vector.load %arg4[%c0_7, %c0_8, %c0_9, %c0_10] : memref<1x1x32x32xf32, #tpu.memory_space<vmem>>, vector<1x1x32x32xf32>
    %9 = vector.shape_cast %8 : vector<1x1x32x32xf32> to vector<32x32xf32>
    %cst_11 = arith.constant dense<0.000000e+00> : vector<2x32xf32>
    %10 = tpu.matmul %7, %9, %cst_11 {dimension_numbers = #tpu.dot_dimension_numbers<[1], [0], [0], [1], [0, 0, 1, 1], [], []>} : vector<2x32xf32>, vector<32x32xf32>, vector<2x32xf32> -> vector<2x32xf32>
    %c0_12 = arith.constant 0 : index
    %c0_13 = arith.constant 0 : index
    %c0_14 = arith.constant 0 : index
    %c0_15 = arith.constant 0 : index
    %11 = vector.load %arg5[%c0_12, %c0_13, %c0_14, %c0_15] : memref<1x1x1x32xf32, #tpu.memory_space<vmem>>, vector<1x1x1x32xf32>
    %12 = vector.shape_cast %11 : vector<1x1x1x32xf32> to vector<1x32xf32>
    %13 = vector.broadcast %12 : vector<1x32xf32> to vector<2x32xf32>
    %14 = arith.addf %10, %13 : vector<2x32xf32>
    %c0_16 = arith.constant 0 : index
    %c0_17 = arith.constant 0 : index
    %c0_18 = arith.constant 0 : index
    %15 = vector.load %arg6[%c0_16, %c0_17, %c0_18] : memref<1x1x32xf32, #tpu.memory_space<vmem>>, vector<1x1x32xf32>
    %16 = vector.shape_cast %15 : vector<1x1x32xf32> to vector<1x32xf32>
    %c0_19 = arith.constant 0 : index
    %c0_20 = arith.constant 0 : index
    %c0_21 = arith.constant 0 : index
    %17 = vector.load %arg7[%c0_19, %c0_20, %c0_21] : memref<1x1x32xf32, #tpu.memory_space<vmem>>, vector<1x1x32xf32>
    %18 = vector.shape_cast %17 : vector<1x1x32xf32> to vector<1x32xf32>
    %cst_22 = arith.constant 1.000000e+00 : f32
    %19 = vector.broadcast %cst_22 : f32 to vector<1x32xf32>
    %20 = arith.subf %19, %16 : vector<1x32xf32>
    %21 = vector.broadcast %18 : vector<1x32xf32> to vector<2x32xf32>
    %22 = arith.mulf %21, %14 : vector<2x32xf32>
    %23 = arith.negf %22 : vector<2x32xf32>
    %24 = math.exp %23 : vector<2x32xf32>
    %cst_23 = arith.constant 1.000000e+00 : f32
    %25 = vector.broadcast %cst_23 : f32 to vector<2x32xf32>
    %26 = arith.addf %25, %24 : vector<2x32xf32>
    %27 = arith.divf %25, %26 : vector<2x32xf32>
    %28 = vector.broadcast %20 : vector<1x32xf32> to vector<2x32xf32>
    %29 = arith.mulf %28, %27 : vector<2x32xf32>
    %30 = vector.broadcast %16 : vector<1x32xf32> to vector<2x32xf32>
    %31 = arith.addf %30, %29 : vector<2x32xf32>
    %32 = arith.mulf %31, %14 : vector<2x32xf32>
    %c0_24 = arith.constant 0 : index
    %c0_25 = arith.constant 0 : index
    %c0_26 = arith.constant 0 : index
    %33 = vector.load %arg8[%c0_24, %c0_25, %c0_26] : memref<1x32x32xf32, #tpu.memory_space<vmem>>, vector<1x32x32xf32>
    %34 = vector.shape_cast %33 : vector<1x32x32xf32> to vector<32x32xf32>
    %cst_27 = arith.constant dense<0.000000e+00> : vector<2x32xf32>
    %35 = tpu.matmul %7, %34, %cst_27 {dimension_numbers = #tpu.dot_dimension_numbers<[1], [0], [0], [1], [0, 0, 1, 1], [], []>} : vector<2x32xf32>, vector<32x32xf32>, vector<2x32xf32> -> vector<2x32xf32>
    %c0_28 = arith.constant 0 : index
    %c0_29 = arith.constant 0 : index
    %c0_30 = arith.constant 0 : index
    %36 = vector.load %arg9[%c0_28, %c0_29, %c0_30] : memref<1x1x32xf32, #tpu.memory_space<vmem>>, vector<1x1x32xf32>
    %37 = vector.shape_cast %36 : vector<1x1x32xf32> to vector<1x32xf32>
    %38 = vector.broadcast %37 : vector<1x32xf32> to vector<2x32xf32>
    %39 = arith.addf %35, %38 : vector<2x32xf32>
    %c0_31 = arith.constant 0 : index
    %c0_32 = arith.constant 0 : index
    %c0_33 = arith.constant 0 : index
    %40 = vector.load %arg10[%c0_31, %c0_32, %c0_33] : memref<1x32x32xf32, #tpu.memory_space<vmem>>, vector<1x32x32xf32>
    %41 = vector.shape_cast %40 : vector<1x32x32xf32> to vector<32x32xf32>
    %cst_34 = arith.constant dense<0.000000e+00> : vector<2x32xf32>
    %42 = tpu.matmul %32, %41, %cst_34 {dimension_numbers = #tpu.dot_dimension_numbers<[1], [0], [0], [1], [0, 0, 1, 1], [], []>} : vector<2x32xf32>, vector<32x32xf32>, vector<2x32xf32> -> vector<2x32xf32>
    %c0_35 = arith.constant 0 : index
    %c0_36 = arith.constant 0 : index
    %c0_37 = arith.constant 0 : index
    %43 = vector.load %arg11[%c0_35, %c0_36, %c0_37] : memref<1x1x32xf32, #tpu.memory_space<vmem>>, vector<1x1x32xf32>
    %44 = vector.shape_cast %43 : vector<1x1x32xf32> to vector<1x32xf32>
    %45 = vector.broadcast %44 : vector<1x32xf32> to vector<2x32xf32>
    %46 = arith.addf %42, %45 : vector<2x32xf32>
    %47 = arith.addf %46, %39 : vector<2x32xf32>
    %c0_38 = arith.constant 0 : index
    %c0_39 = arith.constant 0 : index
    %48 = vector.load %arg12[%c0_38, %c0_39] : memref<1x32xf32, #tpu.memory_space<vmem>>, vector<1x32xf32>
    %c0_40 = arith.constant 0 : index
    %c0_41 = arith.constant 0 : index
    %49 = vector.load %arg13[%c0_40, %c0_41] : memref<1x32xf32, #tpu.memory_space<vmem>>, vector<1x32xf32>
    %cst_42 = arith.constant 1.000000e+00 : f32
    %50 = vector.broadcast %cst_42 : f32 to vector<1x32xf32>
    %51 = arith.subf %50, %48 : vector<1x32xf32>
    %52 = vector.broadcast %49 : vector<1x32xf32> to vector<2x32xf32>
    %53 = arith.mulf %52, %47 : vector<2x32xf32>
    %54 = arith.negf %53 : vector<2x32xf32>
    %55 = math.exp %54 : vector<2x32xf32>
    %cst_43 = arith.constant 1.000000e+00 : f32
    %56 = vector.broadcast %cst_43 : f32 to vector<2x32xf32>
    %57 = arith.addf %56, %55 : vector<2x32xf32>
    %58 = arith.divf %56, %57 : vector<2x32xf32>
    %59 = vector.broadcast %51 : vector<1x32xf32> to vector<2x32xf32>
    %60 = arith.mulf %59, %58 : vector<2x32xf32>
    %61 = vector.broadcast %48 : vector<1x32xf32> to vector<2x32xf32>
    %62 = arith.addf %61, %60 : vector<2x32xf32>
    %63 = arith.mulf %62, %47 : vector<2x32xf32>
    %c0_44 = arith.constant 0 : index
    %c0_45 = arith.constant 0 : index
    %c0_46 = arith.constant 0 : index
    %64 = vector.load %arg14[%c0_44, %c0_45, %c0_46] : memref<1x32x64xf32, #tpu.memory_space<vmem>>, vector<1x32x64xf32>
    %65 = vector.shape_cast %64 : vector<1x32x64xf32> to vector<32x64xf32>
    %cst_47 = arith.constant dense<0.000000e+00> : vector<2x64xf32>
    %66 = tpu.matmul %63, %65, %cst_47 {dimension_numbers = #tpu.dot_dimension_numbers<[1], [0], [0], [1], [0, 0, 1, 1], [], []>} : vector<2x32xf32>, vector<32x64xf32>, vector<2x64xf32> -> vector<2x64xf32>
    %c0_48 = arith.constant 0 : index
    %c0_49 = arith.constant 0 : index
    %c0_50 = arith.constant 0 : index
    %67 = vector.load %arg15[%c0_48, %c0_49, %c0_50] : memref<1x1x64xf32, #tpu.memory_space<vmem>>, vector<1x1x64xf32>
    %68 = vector.shape_cast %67 : vector<1x1x64xf32> to vector<1x64xf32>
    %69 = vector.broadcast %68 : vector<1x64xf32> to vector<2x64xf32>
    %70 = arith.addf %66, %69 : vector<2x64xf32>
    %71 = vector.shape_cast %70 : vector<2x64xf32> to vector<2x4x16xf32>
    %c0_51 = arith.constant 0 : index
    %c0_52 = arith.constant 0 : index
    %c0_53 = arith.constant 0 : index
    %c0_54 = arith.constant 0 : index
    %c0_55 = arith.constant 0 : index
    %72 = vector.load %arg16[%c0_51, %c0_52, %c0_53, %c0_54, %c0_55] : memref<1x1x3x16x16xf32, #tpu.memory_space<vmem>>, vector<1x1x1x16x16xf32>
    %73 = vector.shape_cast %72 : vector<1x1x1x16x16xf32> to vector<16x16xf32>
    "tpu.trace_start"() <{level = 10 : i32, message = "bsd,de->bse"}> : () -> ()
    %cst_56 = arith.constant dense<0.000000e+00> : vector<2x4x16xf32>
    %74 = tpu.matmul %71, %73, %cst_56 {dimension_numbers = #tpu.dot_dimension_numbers<[2], [0], [0, 1], [1], [0, 0, 0, 1, 1, 1], [], []>} : vector<2x4x16xf32>, vector<16x16xf32>, vector<2x4x16xf32> -> vector<2x4x16xf32>
    "tpu.trace_stop"() : () -> ()
    %c0_57 = arith.constant 0 : index
    %c0_58 = arith.constant 0 : index
    %c0_59 = arith.constant 0 : index
    %c0_60 = arith.constant 0 : index
    %c0_61 = arith.constant 0 : index
    %75 = vector.load %arg17[%c0_57, %c0_58, %c0_59, %c0_60, %c0_61] : memref<1x1x3x1x16xf32, #tpu.memory_space<vmem>>, vector<1x1x1x1x16xf32>
    %76 = vector.shape_cast %75 : vector<1x1x1x1x16xf32> to vector<1x16xf32>
    %77 = vector.shape_cast %76 : vector<1x16xf32> to vector<1x1x16xf32>
    %78 = vector.broadcast %77 : vector<1x1x16xf32> to vector<2x4x16xf32>
    %79 = arith.addf %74, %78 : vector<2x4x16xf32>
    %c0_62 = arith.constant 0 : index
    %c0_63 = arith.constant 0 : index
    %c1 = arith.constant 1 : index
    %c0_64 = arith.constant 0 : index
    %c0_65 = arith.constant 0 : index
    %80 = vector.load %arg16[%c0_62, %c0_63, %c1, %c0_64, %c0_65] : memref<1x1x3x16x16xf32, #tpu.memory_space<vmem>>, vector<1x1x1x16x16xf32>
    %81 = vector.shape_cast %80 : vector<1x1x1x16x16xf32> to vector<16x16xf32>
    "tpu.trace_start"() <{level = 10 : i32, message = "bsd,de->bse"}> : () -> ()
    %cst_66 = arith.constant dense<0.000000e+00> : vector<2x4x16xf32>
    %82 = tpu.matmul %71, %81, %cst_66 {dimension_numbers = #tpu.dot_dimension_numbers<[2], [0], [0, 1], [1], [0, 0, 0, 1, 1, 1], [], []>} : vector<2x4x16xf32>, vector<16x16xf32>, vector<2x4x16xf32> -> vector<2x4x16xf32>
    "tpu.trace_stop"() : () -> ()
    %c0_67 = arith.constant 0 : index
    %c0_68 = arith.constant 0 : index
    %c1_69 = arith.constant 1 : index
    %c0_70 = arith.constant 0 : index
    %c0_71 = arith.constant 0 : index
    %83 = vector.load %arg17[%c0_67, %c0_68, %c1_69, %c0_70, %c0_71] : memref<1x1x3x1x16xf32, #tpu.memory_space<vmem>>, vector<1x1x1x1x16xf32>
    %84 = vector.shape_cast %83 : vector<1x1x1x1x16xf32> to vector<1x16xf32>
    %85 = vector.shape_cast %84 : vector<1x16xf32> to vector<1x1x16xf32>
    %86 = vector.broadcast %85 : vector<1x1x16xf32> to vector<2x4x16xf32>
    %87 = arith.addf %82, %86 : vector<2x4x16xf32>
    %c0_72 = arith.constant 0 : index
    %c0_73 = arith.constant 0 : index
    %c2 = arith.constant 2 : index
    %c0_74 = arith.constant 0 : index
    %c0_75 = arith.constant 0 : index
    %88 = vector.load %arg16[%c0_72, %c0_73, %c2, %c0_74, %c0_75] : memref<1x1x3x16x16xf32, #tpu.memory_space<vmem>>, vector<1x1x1x16x16xf32>
    %89 = vector.shape_cast %88 : vector<1x1x1x16x16xf32> to vector<16x16xf32>
    "tpu.trace_start"() <{level = 10 : i32, message = "bsd,de->bse"}> : () -> ()
    %cst_76 = arith.constant dense<0.000000e+00> : vector<2x4x16xf32>
    %90 = tpu.matmul %71, %89, %cst_76 {dimension_numbers = #tpu.dot_dimension_numbers<[2], [0], [0, 1], [1], [0, 0, 0, 1, 1, 1], [], []>} : vector<2x4x16xf32>, vector<16x16xf32>, vector<2x4x16xf32> -> vector<2x4x16xf32>
    "tpu.trace_stop"() : () -> ()
    %c0_77 = arith.constant 0 : index
    %c0_78 = arith.constant 0 : index
    %c2_79 = arith.constant 2 : index
    %c0_80 = arith.constant 0 : index
    %c0_81 = arith.constant 0 : index
    %91 = vector.load %arg17[%c0_77, %c0_78, %c2_79, %c0_80, %c0_81] : memref<1x1x3x1x16xf32, #tpu.memory_space<vmem>>, vector<1x1x1x1x16xf32>
    %92 = vector.shape_cast %91 : vector<1x1x1x1x16xf32> to vector<1x16xf32>
    %93 = vector.shape_cast %92 : vector<1x16xf32> to vector<1x1x16xf32>
    %94 = vector.broadcast %93 : vector<1x1x16xf32> to vector<2x4x16xf32>
    %95 = arith.addf %90, %94 : vector<2x4x16xf32>
    "tpu.trace_start"() <{level = 10 : i32, message = "bqd,bkd->bqk"}> : () -> ()
    %cst_82 = arith.constant dense<0.000000e+00> : vector<2x4x4xf32>
    %96 = tpu.matmul %79, %87, %cst_82 {dimension_numbers = #tpu.dot_dimension_numbers<[2], [2], [1], [1], [0, 0, 0, 1, 1, 1], [0], [0]>} : vector<2x4x16xf32>, vector<2x4x16xf32>, vector<2x4x4xf32> -> vector<2x4x4xf32>
    "tpu.trace_stop"() : () -> ()
    %cst_83 = arith.constant 2.500000e-01 : f32
    %97 = vector.broadcast %cst_83 : f32 to vector<2x4x4xf32>
    %98 = arith.mulf %96, %97 : vector<2x4x4xf32>
    %cst_84 = arith.constant dense<0xFF800000> : vector<2x4xf32>
    %99 = vector.multi_reduction <maximumf>, %98, %cst_84 [2] : vector<2x4x4xf32> to vector<2x4xf32>
    %100 = vector.shape_cast %99 : vector<2x4xf32> to vector<2x4x1xf32>
    %101 = vector.broadcast %100 : vector<2x4x1xf32> to vector<2x4x4xf32>
    %102 = arith.subf %98, %101 : vector<2x4x4xf32>
    %103 = math.exp %102 : vector<2x4x4xf32>
    %cst_85 = arith.constant dense<0.000000e+00> : vector<2x4xf32>
    %104 = vector.multi_reduction <add>, %103, %cst_85 [2] : vector<2x4x4xf32> to vector<2x4xf32>
    %105 = vector.shape_cast %104 : vector<2x4xf32> to vector<2x4x1xf32>
    %106 = tpu.reciprocal %105 {approx = true} : vector<2x4x1xf32> -> vector<2x4x1xf32>
    %107 = vector.broadcast %106 : vector<2x4x1xf32> to vector<2x4x4xf32>
    %108 = arith.mulf %103, %107 : vector<2x4x4xf32>
    "tpu.trace_start"() <{level = 10 : i32, message = "bqk,bkd->bqd"}> : () -> ()
    %cst_86 = arith.constant dense<0.000000e+00> : vector<2x4x16xf32>
    %109 = tpu.matmul %108, %95, %cst_86 {dimension_numbers = #tpu.dot_dimension_numbers<[2], [1], [1], [2], [0, 0, 0, 1, 1, 2], [0], [0]>} : vector<2x4x4xf32>, vector<2x4x16xf32>, vector<2x4x16xf32> -> vector<2x4x16xf32>
    "tpu.trace_stop"() : () -> ()
    %c0_87 = arith.constant 0 : index
    %c0_88 = arith.constant 0 : index
    %c0_89 = arith.constant 0 : index
    %c0_90 = arith.constant 0 : index
    %110 = vector.load %arg18[%c0_87, %c0_88, %c0_89, %c0_90] : memref<1x1x16x16xf32, #tpu.memory_space<vmem>>, vector<1x1x16x16xf32>
    %111 = vector.shape_cast %110 : vector<1x1x16x16xf32> to vector<16x16xf32>
    "tpu.trace_start"() <{level = 10 : i32, message = "bsd,de->bse"}> : () -> ()
    %cst_91 = arith.constant dense<0.000000e+00> : vector<2x4x16xf32>
    %112 = tpu.matmul %109, %111, %cst_91 {dimension_numbers = #tpu.dot_dimension_numbers<[2], [0], [0, 1], [1], [0, 0, 0, 1, 1, 1], [], []>} : vector<2x4x16xf32>, vector<16x16xf32>, vector<2x4x16xf32> -> vector<2x4x16xf32>
    "tpu.trace_stop"() : () -> ()
    %c0_92 = arith.constant 0 : index
    %c0_93 = arith.constant 0 : index
    %c0_94 = arith.constant 0 : index
    %c0_95 = arith.constant 0 : index
    %113 = vector.load %arg19[%c0_92, %c0_93, %c0_94, %c0_95] : memref<1x1x1x16xf32, #tpu.memory_space<vmem>>, vector<1x1x1x16xf32>
    %114 = vector.shape_cast %113 : vector<1x1x1x16xf32> to vector<1x16xf32>
    %115 = vector.shape_cast %114 : vector<1x16xf32> to vector<1x1x16xf32>
    %116 = vector.broadcast %115 : vector<1x1x16xf32> to vector<2x4x16xf32>
    %117 = arith.addf %112, %116 : vector<2x4x16xf32>
    %118 = arith.addf %71, %117 : vector<2x4x16xf32>
    %c0_96 = arith.constant 0 : index
    %c0_97 = arith.constant 0 : index
    %c0_98 = arith.constant 0 : index
    %c0_99 = arith.constant 0 : index
    %119 = vector.load %arg20[%c0_96, %c0_97, %c0_98, %c0_99] : memref<1x1x1x16xf32, #tpu.memory_space<vmem>>, vector<1x1x1x16xf32>
    %120 = vector.shape_cast %119 : vector<1x1x1x16xf32> to vector<1x16xf32>
    %c0_100 = arith.constant 0 : index
    %c0_101 = arith.constant 0 : index
    %c0_102 = arith.constant 0 : index
    %c0_103 = arith.constant 0 : index
    %121 = vector.load %arg21[%c0_100, %c0_101, %c0_102, %c0_103] : memref<1x1x1x16xf32, #tpu.memory_space<vmem>>, vector<1x1x1x16xf32>
    %122 = vector.shape_cast %121 : vector<1x1x1x16xf32> to vector<1x16xf32>
    %cst_104 = arith.constant dense<0.000000e+00> : vector<2x4xf32>
    %123 = vector.multi_reduction <add>, %118, %cst_104 [2] : vector<2x4x16xf32> to vector<2x4xf32>
    %124 = vector.shape_cast %123 : vector<2x4xf32> to vector<2x4x1xf32>
    %cst_105 = arith.constant 1.600000e+01 : f32
    %125 = vector.broadcast %cst_105 : f32 to vector<2x4x1xf32>
    %126 = arith.divf %124, %125 : vector<2x4x1xf32>
    %127 = vector.broadcast %126 : vector<2x4x1xf32> to vector<2x4x16xf32>
    %128 = arith.subf %118, %127 : vector<2x4x16xf32>
    %129 = arith.mulf %128, %128 : vector<2x4x16xf32>
    %cst_106 = arith.constant dense<0.000000e+00> : vector<2x4xf32>
    %130 = vector.multi_reduction <add>, %129, %cst_106 [2] : vector<2x4x16xf32> to vector<2x4xf32>
    %131 = vector.shape_cast %130 : vector<2x4xf32> to vector<2x4x1xf32>
    %cst_107 = arith.constant 1.600000e+01 : f32
    %132 = vector.broadcast %cst_107 : f32 to vector<2x4x1xf32>
    %133 = arith.divf %131, %132 : vector<2x4x1xf32>
    %134 = vector.broadcast %126 : vector<2x4x1xf32> to vector<2x4x16xf32>
    %135 = arith.subf %118, %134 : vector<2x4x16xf32>
    %cst_108 = arith.constant 9.99999974E-6 : f32
    %136 = vector.broadcast %cst_108 : f32 to vector<2x4x1xf32>
    %137 = arith.addf %133, %136 : vector<2x4x1xf32>
    %138 = math.rsqrt %137 : vector<2x4x1xf32>
    %139 = vector.broadcast %138 : vector<2x4x1xf32> to vector<2x4x16xf32>
    %140 = arith.mulf %135, %139 : vector<2x4x16xf32>
    %141 = vector.shape_cast %120 : vector<1x16xf32> to vector<1x1x16xf32>
    %142 = vector.broadcast %141 : vector<1x1x16xf32> to vector<2x4x16xf32>
    %143 = arith.mulf %140, %142 : vector<2x4x16xf32>
    %144 = vector.shape_cast %122 : vector<1x16xf32> to vector<1x1x16xf32>
    %145 = vector.broadcast %144 : vector<1x1x16xf32> to vector<2x4x16xf32>
    %146 = arith.addf %143, %145 : vector<2x4x16xf32>
    %c0_109 = arith.constant 0 : index
    %c0_110 = arith.constant 0 : index
    %c0_111 = arith.constant 0 : index
    %c0_112 = arith.constant 0 : index
    %147 = vector.load %arg22[%c0_109, %c0_110, %c0_111, %c0_112] : memref<1x1x16x32xf32, #tpu.memory_space<vmem>>, vector<1x1x16x32xf32>
    %148 = vector.shape_cast %147 : vector<1x1x16x32xf32> to vector<16x32xf32>
    "tpu.trace_start"() <{level = 10 : i32, message = "bsd,dh->bsh"}> : () -> ()
    %cst_113 = arith.constant dense<0.000000e+00> : vector<2x4x32xf32>
    %149 = tpu.matmul %146, %148, %cst_113 {dimension_numbers = #tpu.dot_dimension_numbers<[2], [0], [0, 1], [1], [0, 0, 0, 1, 1, 1], [], []>} : vector<2x4x16xf32>, vector<16x32xf32>, vector<2x4x32xf32> -> vector<2x4x32xf32>
    "tpu.trace_stop"() : () -> ()
    %c0_114 = arith.constant 0 : index
    %c0_115 = arith.constant 0 : index
    %c0_116 = arith.constant 0 : index
    %c0_117 = arith.constant 0 : index
    %150 = vector.load %arg23[%c0_114, %c0_115, %c0_116, %c0_117] : memref<1x1x1x32xf32, #tpu.memory_space<vmem>>, vector<1x1x1x32xf32>
    %151 = vector.shape_cast %150 : vector<1x1x1x32xf32> to vector<1x32xf32>
    %152 = vector.shape_cast %151 : vector<1x32xf32> to vector<1x1x32xf32>
    %153 = vector.broadcast %152 : vector<1x1x32xf32> to vector<2x4x32xf32>
    %154 = arith.addf %149, %153 : vector<2x4x32xf32>
    %cst_118 = arith.constant 0.000000e+00 : f32
    %155 = vector.broadcast %cst_118 : f32 to vector<2x4x32xf32>
    %156 = arith.maximumf %154, %155 : vector<2x4x32xf32>
    %c0_119 = arith.constant 0 : index
    %c0_120 = arith.constant 0 : index
    %c0_121 = arith.constant 0 : index
    %c0_122 = arith.constant 0 : index
    %157 = vector.load %arg24[%c0_119, %c0_120, %c0_121, %c0_122] : memref<1x1x32x16xf32, #tpu.memory_space<vmem>>, vector<1x1x32x16xf32>
    %158 = vector.shape_cast %157 : vector<1x1x32x16xf32> to vector<32x16xf32>
    "tpu.trace_start"() <{level = 10 : i32, message = "bsh,hd->bsd"}> : () -> ()
    %cst_123 = arith.constant dense<0.000000e+00> : vector<2x4x16xf32>
    %159 = tpu.matmul %156, %158, %cst_123 {dimension_numbers = #tpu.dot_dimension_numbers<[2], [0], [0, 1], [1], [0, 0, 0, 1, 1, 1], [], []>} : vector<2x4x32xf32>, vector<32x16xf32>, vector<2x4x16xf32> -> vector<2x4x16xf32>
    "tpu.trace_stop"() : () -> ()
    %c0_124 = arith.constant 0 : index
    %c0_125 = arith.constant 0 : index
    %c0_126 = arith.constant 0 : index
    %c0_127 = arith.constant 0 : index
    %160 = vector.load %arg25[%c0_124, %c0_125, %c0_126, %c0_127] : memref<1x1x1x16xf32, #tpu.memory_space<vmem>>, vector<1x1x1x16xf32>
    %161 = vector.shape_cast %160 : vector<1x1x1x16xf32> to vector<1x16xf32>
    %162 = vector.shape_cast %161 : vector<1x16xf32> to vector<1x1x16xf32>
    %163 = vector.broadcast %162 : vector<1x1x16xf32> to vector<2x4x16xf32>
    %164 = arith.addf %159, %163 : vector<2x4x16xf32>
    %165 = arith.addf %146, %164 : vector<2x4x16xf32>
    %c0_128 = arith.constant 0 : index
    %c0_129 = arith.constant 0 : index
    %c0_130 = arith.constant 0 : index
    %c0_131 = arith.constant 0 : index
    %166 = vector.load %arg26[%c0_128, %c0_129, %c0_130, %c0_131] : memref<1x1x1x16xf32, #tpu.memory_space<vmem>>, vector<1x1x1x16xf32>
    %167 = vector.shape_cast %166 : vector<1x1x1x16xf32> to vector<1x16xf32>
    %c0_132 = arith.constant 0 : index
    %c0_133 = arith.constant 0 : index
    %c0_134 = arith.constant 0 : index
    %c0_135 = arith.constant 0 : index
    %168 = vector.load %arg27[%c0_132, %c0_133, %c0_134, %c0_135] : memref<1x1x1x16xf32, #tpu.memory_space<vmem>>, vector<1x1x1x16xf32>
    %169 = vector.shape_cast %168 : vector<1x1x1x16xf32> to vector<1x16xf32>
    %cst_136 = arith.constant dense<0.000000e+00> : vector<2x4xf32>
    %170 = vector.multi_reduction <add>, %165, %cst_136 [2] : vector<2x4x16xf32> to vector<2x4xf32>
    %171 = vector.shape_cast %170 : vector<2x4xf32> to vector<2x4x1xf32>
    %cst_137 = arith.constant 1.600000e+01 : f32
    %172 = vector.broadcast %cst_137 : f32 to vector<2x4x1xf32>
    %173 = arith.divf %171, %172 : vector<2x4x1xf32>
    %174 = vector.broadcast %173 : vector<2x4x1xf32> to vector<2x4x16xf32>
    %175 = arith.subf %165, %174 : vector<2x4x16xf32>
    %176 = arith.mulf %175, %175 : vector<2x4x16xf32>
    %cst_138 = arith.constant dense<0.000000e+00> : vector<2x4xf32>
    %177 = vector.multi_reduction <add>, %176, %cst_138 [2] : vector<2x4x16xf32> to vector<2x4xf32>
    %178 = vector.shape_cast %177 : vector<2x4xf32> to vector<2x4x1xf32>
    %cst_139 = arith.constant 1.600000e+01 : f32
    %179 = vector.broadcast %cst_139 : f32 to vector<2x4x1xf32>
    %180 = arith.divf %178, %179 : vector<2x4x1xf32>
    %181 = vector.broadcast %173 : vector<2x4x1xf32> to vector<2x4x16xf32>
    %182 = arith.subf %165, %181 : vector<2x4x16xf32>
    %cst_140 = arith.constant 9.99999974E-6 : f32
    %183 = vector.broadcast %cst_140 : f32 to vector<2x4x1xf32>
    %184 = arith.addf %180, %183 : vector<2x4x1xf32>
    %185 = math.rsqrt %184 : vector<2x4x1xf32>
    %186 = vector.broadcast %185 : vector<2x4x1xf32> to vector<2x4x16xf32>
    %187 = arith.mulf %182, %186 : vector<2x4x16xf32>
    %188 = vector.shape_cast %167 : vector<1x16xf32> to vector<1x1x16xf32>
    %189 = vector.broadcast %188 : vector<1x1x16xf32> to vector<2x4x16xf32>
    %190 = arith.mulf %187, %189 : vector<2x4x16xf32>
    %191 = vector.shape_cast %169 : vector<1x16xf32> to vector<1x1x16xf32>
    %192 = vector.broadcast %191 : vector<1x1x16xf32> to vector<2x4x16xf32>
    %193 = arith.addf %190, %192 : vector<2x4x16xf32>
    %c0_141 = arith.constant 0 : index
    %c0_142 = arith.constant 0 : index
    %c0_143 = arith.constant 0 : index
    %c0_144 = arith.constant 0 : index
    %194 = vector.load %arg28[%c0_141, %c0_142, %c0_143, %c0_144] : memref<1x1x4x16xf32, #tpu.memory_space<vmem>>, vector<1x1x4x16xf32>
    %195 = vector.shape_cast %194 : vector<1x1x4x16xf32> to vector<4x16xf32>
    %c0_145 = arith.constant 0 : index
    %c0_146 = arith.constant 0 : index
    %c0_147 = arith.constant 0 : index
    %c0_148 = arith.constant 0 : index
    %196 = vector.load %arg29[%c0_145, %c0_146, %c0_147, %c0_148] : memref<1x1x4x16xf32, #tpu.memory_space<vmem>>, vector<1x1x4x16xf32>
    %197 = vector.shape_cast %196 : vector<1x1x4x16xf32> to vector<4x16xf32>
    %cst_149 = arith.constant 1.000000e+00 : f32
    %198 = vector.broadcast %cst_149 : f32 to vector<4x16xf32>
    %199 = arith.subf %198, %195 : vector<4x16xf32>
    %200 = vector.shape_cast %197 : vector<4x16xf32> to vector<1x4x16xf32>
    %201 = vector.broadcast %200 : vector<1x4x16xf32> to vector<2x4x16xf32>
    %202 = arith.mulf %201, %193 : vector<2x4x16xf32>
    %203 = arith.negf %202 : vector<2x4x16xf32>
    %204 = math.exp %203 : vector<2x4x16xf32>
    %cst_150 = arith.constant 1.000000e+00 : f32
    %205 = vector.broadcast %cst_150 : f32 to vector<2x4x16xf32>
    %206 = arith.addf %205, %204 : vector<2x4x16xf32>
    %207 = arith.divf %205, %206 : vector<2x4x16xf32>
    %208 = vector.shape_cast %199 : vector<4x16xf32> to vector<1x4x16xf32>
    %209 = vector.broadcast %208 : vector<1x4x16xf32> to vector<2x4x16xf32>
    %210 = arith.mulf %209, %207 : vector<2x4x16xf32>
    %211 = vector.shape_cast %195 : vector<4x16xf32> to vector<1x4x16xf32>
    %212 = vector.broadcast %211 : vector<1x4x16xf32> to vector<2x4x16xf32>
    %213 = arith.addf %212, %210 : vector<2x4x16xf32>
    %214 = arith.mulf %213, %193 : vector<2x4x16xf32>
    %215 = vector.shape_cast %214 : vector<2x4x16xf32> to vector<2x64xf32>
    %c0_151 = arith.constant 0 : index
    %c0_152 = arith.constant 0 : index
    %c0_153 = arith.constant 0 : index
    %216 = vector.load %arg30[%c0_151, %c0_152, %c0_153] : memref<1x64x16xf32, #tpu.memory_space<vmem>>, vector<1x64x16xf32>
    %217 = vector.shape_cast %216 : vector<1x64x16xf32> to vector<64x16xf32>
    %cst_154 = arith.constant dense<0.000000e+00> : vector<2x16xf32>
    %218 = tpu.matmul %215, %217, %cst_154 {dimension_numbers = #tpu.dot_dimension_numbers<[1], [0], [0], [1], [0, 0, 1, 1], [], []>} : vector<2x64xf32>, vector<64x16xf32>, vector<2x16xf32> -> vector<2x16xf32>
    %c0_155 = arith.constant 0 : index
    %c0_156 = arith.constant 0 : index
    %c0_157 = arith.constant 0 : index
    %219 = vector.load %arg31[%c0_155, %c0_156, %c0_157] : memref<1x1x16xf32, #tpu.memory_space<vmem>>, vector<1x1x16xf32>
    %220 = vector.shape_cast %219 : vector<1x1x16xf32> to vector<1x16xf32>
    %221 = vector.broadcast %220 : vector<1x16xf32> to vector<2x16xf32>
    %222 = arith.addf %218, %221 : vector<2x16xf32>
    %c0_158 = arith.constant 0 : index
    %c0_159 = arith.constant 0 : index
    %c0_160 = arith.constant 0 : index
    %223 = vector.load %arg32[%c0_158, %c0_159, %c0_160] : memref<1x2x16xf32, #tpu.memory_space<vmem>>, vector<1x2x16xf32>
    %224 = vector.shape_cast %223 : vector<1x2x16xf32> to vector<2x16xf32>
    %225 = vector.shape_cast %222 : vector<2x16xf32> to vector<1x2x16xf32>
    tpu.vector_store %arg32[%c0_158, %c0_159, %c0_160], %225 {strides = array<i32>} : memref<1x2x16xf32, #tpu.memory_space<vmem>>, vector<1x2x16xf32>,
    return
  }
  func.func @transform_0(%arg0: i32) -> (i32, i32) {
    %c0_i32 = arith.constant 0 : i32
    %c0_i32_0 = arith.constant 0 : i32
    %c0_i32_1 = arith.constant 0 : i32
    return %c0_i32, %c0_i32_0 : i32, i32
  }
  func.func @transform_1(%arg0: i32) -> (i32, i32, i32) {
    %c0_i32 = arith.constant 0 : i32
    %c0_i32_0 = arith.constant 0 : i32
    %c0_i32_1 = arith.constant 0 : i32
    return %arg0, %c0_i32, %c0_i32_0 : i32, i32, i32
  }
  func.func @transform_2(%arg0: i32) -> (i32, i32, i32) {
    %c0_i32 = arith.constant 0 : i32
    %c0_i32_0 = arith.constant 0 : i32
    %c0_i32_1 = arith.constant 0 : i32
    return %arg0, %c0_i32, %c0_i32_0 : i32, i32, i32
  }
  func.func @transform_3(%arg0: i32) -> (i32, i32, i32, i32) {
    %c0_i32 = arith.constant 0 : i32
    %c0_i32_0 = arith.constant 0 : i32
    %c0_i32_1 = arith.constant 0 : i32
    %c0_i32_2 = arith.constant 0 : i32
    return %arg0, %c0_i32, %c0_i32_0, %c0_i32_1 : i32, i32, i32, i32
  }
  func.func @transform_4(%arg0: i32) -> (i32, i32, i32, i32) {
    %c0_i32 = arith.constant 0 : i32
    %c0_i32_0 = arith.constant 0 : i32
    %c0_i32_1 = arith.constant 0 : i32
    %c0_i32_2 = arith.constant 0 : i32
    return %arg0, %c0_i32, %c0_i32_0, %c0_i32_1 : i32, i32, i32, i32
  }
  func.func @transform_5(%arg0: i32) -> (i32, i32, i32) {
    %c0_i32 = arith.constant 0 : i32
    %c0_i32_0 = arith.constant 0 : i32
    %c0_i32_1 = arith.constant 0 : i32
    %c0_i32_2 = arith.constant 0 : i32
    return %c0_i32, %c0_i32_0, %c0_i32_1 : i32, i32, i32
  }
  func.func @transform_6(%arg0: i32) -> (i32, i32, i32) {
    %c0_i32 = arith.constant 0 : i32
    %c0_i32_0 = arith.constant 0 : i32
    %c0_i32_1 = arith.constant 0 : i32
    %c0_i32_2 = arith.constant 0 : i32
    return %c0_i32, %c0_i32_0, %c0_i32_1 : i32, i32, i32
  }
  func.func @transform_7(%arg0: i32) -> (i32, i32, i32) {
    %c0_i32 = arith.constant 0 : i32
    %c0_i32_0 = arith.constant 0 : i32
    %c0_i32_1 = arith.constant 0 : i32
    return %arg0, %c0_i32, %c0_i32_0 : i32, i32, i32
  }
  func.func @transform_8(%arg0: i32) -> (i32, i32, i32) {
    %c0_i32 = arith.constant 0 : i32
    %c0_i32_0 = arith.constant 0 : i32
    %c0_i32_1 = arith.constant 0 : i32
    return %arg0, %c0_i32, %c0_i32_0 : i32, i32, i32
  }
  func.func @transform_9(%arg0: i32) -> (i32, i32, i32) {
    %c0_i32 = arith.constant 0 : i32
    %c0_i32_0 = arith.constant 0 : i32
    %c0_i32_1 = arith.constant 0 : i32
    return %arg0, %c0_i32, %c0_i32_0 : i32, i32, i32
  }
  func.func @transform_10(%arg0: i32) -> (i32, i32, i32) {
    %c0_i32 = arith.constant 0 : i32
    %c0_i32_0 = arith.constant 0 : i32
    %c0_i32_1 = arith.constant 0 : i32
    return %arg0, %c0_i32, %c0_i32_0 : i32, i32, i32
  }
  func.func @transform_11(%arg0: i32) -> (i32, i32) {
    %c0_i32 = arith.constant 0 : i32
    %c0_i32_0 = arith.constant 0 : i32
    %c0_i32_1 = arith.constant 0 : i32
    return %c0_i32, %c0_i32_0 : i32, i32
  }
  func.func @transform_12(%arg0: i32) -> (i32, i32) {
    %c0_i32 = arith.constant 0 : i32
    %c0_i32_0 = arith.constant 0 : i32
    %c0_i32_1 = arith.constant 0 : i32
    return %c0_i32, %c0_i32_0 : i32, i32
  }
  func.func @transform_13(%arg0: i32) -> (i32, i32, i32) {
    %c0_i32 = arith.constant 0 : i32
    %c0_i32_0 = arith.constant 0 : i32
    %c0_i32_1 = arith.constant 0 : i32
    return %arg0, %c0_i32, %c0_i32_0 : i32, i32, i32
  }
  func.func @transform_14(%arg0: i32) -> (i32, i32, i32) {
    %c0_i32 = arith.constant 0 : i32
    %c0_i32_0 = arith.constant 0 : i32
    %c0_i32_1 = arith.constant 0 : i32
    return %arg0, %c0_i32, %c0_i32_0 : i32, i32, i32
  }
  func.func @transform_15(%arg0: i32) -> (i32, i32, i32, i32, i32) {
    %c0_i32 = arith.constant 0 : i32
    %c0_i32_0 = arith.constant 0 : i32
    %c0_i32_1 = arith.constant 0 : i32
    %c0_i32_2 = arith.constant 0 : i32
    %c0_i32_3 = arith.constant 0 : i32
    return %arg0, %c0_i32, %c0_i32_0, %c0_i32_1, %c0_i32_2 : i32, i32, i32, i32, i32
  }
  func.func @transform_16(%arg0: i32) -> (i32, i32, i32, i32, i32) {
    %c0_i32 = arith.constant 0 : i32
    %c0_i32_0 = arith.constant 0 : i32
    %c0_i32_1 = arith.constant 0 : i32
    %c0_i32_2 = arith.constant 0 : i32
    %c0_i32_3 = arith.constant 0 : i32
    return %arg0, %c0_i32, %c0_i32_0, %c0_i32_1, %c0_i32_2 : i32, i32, i32, i32, i32
  }
  func.func @transform_17(%arg0: i32) -> (i32, i32, i32, i32) {
    %c0_i32 = arith.constant 0 : i32
    %c0_i32_0 = arith.constant 0 : i32
    %c0_i32_1 = arith.constant 0 : i32
    %c0_i32_2 = arith.constant 0 : i32
    return %arg0, %c0_i32, %c0_i32_0, %c0_i32_1 : i32, i32, i32, i32
  }
  func.func @transform_18(%arg0: i32) -> (i32, i32, i32, i32) {
    %c0_i32 = arith.constant 0 : i32
    %c0_i32_0 = arith.constant 0 : i32
    %c0_i32_1 = arith.constant 0 : i32
    %c0_i32_2 = arith.constant 0 : i32
    return %arg0, %c0_i32, %c0_i32_0, %c0_i32_1 : i32, i32, i32, i32
  }
  func.func @transform_19(%arg0: i32) -> (i32, i32, i32, i32) {
    %c0_i32 = arith.constant 0 : i32
    %c0_i32_0 = arith.constant 0 : i32
    %c0_i32_1 = arith.constant 0 : i32
    %c0_i32_2 = arith.constant 0 : i32
    return %arg0, %c0_i32, %c0_i32_0, %c0_i32_1 : i32, i32, i32, i32
  }
  func.func @transform_20(%arg0: i32) -> (i32, i32, i32, i32) {
    %c0_i32 = arith.constant 0 : i32
    %c0_i32_0 = arith.constant 0 : i32
    %c0_i32_1 = arith.constant 0 : i32
    %c0_i32_2 = arith.constant 0 : i32
    return %arg0, %c0_i32, %c0_i32_0, %c0_i32_1 : i32, i32, i32, i32
  }
  func.func @transform_21(%arg0: i32) -> (i32, i32, i32, i32) {
    %c0_i32 = arith.constant 0 : i32
    %c0_i32_0 = arith.constant 0 : i32
    %c0_i32_1 = arith.constant 0 : i32
    %c0_i32_2 = arith.constant 0 : i32
    return %arg0, %c0_i32, %c0_i32_0, %c0_i32_1 : i32, i32, i32, i32
  }
  func.func @transform_22(%arg0: i32) -> (i32, i32, i32, i32) {
    %c0_i32 = arith.constant 0 : i32
    %c0_i32_0 = arith.constant 0 : i32
    %c0_i32_1 = arith.constant 0 : i32
    %c0_i32_2 = arith.constant 0 : i32
    return %arg0, %c0_i32, %c0_i32_0, %c0_i32_1 : i32, i32, i32, i32
  }
  func.func @transform_23(%arg0: i32) -> (i32, i32, i32, i32) {
    %c0_i32 = arith.constant 0 : i32
    %c0_i32_0 = arith.constant 0 : i32
    %c0_i32_1 = arith.constant 0 : i32
    %c0_i32_2 = arith.constant 0 : i32
    return %arg0, %c0_i32, %c0_i32_0, %c0_i32_1 : i32, i32, i32, i32
  }
  func.func @transform_24(%arg0: i32) -> (i32, i32, i32, i32) {
    %c0_i32 = arith.constant 0 : i32
    %c0_i32_0 = arith.constant 0 : i32
    %c0_i32_1 = arith.constant 0 : i32
    %c0_i32_2 = arith.constant 0 : i32
    return %arg0, %c0_i32, %c0_i32_0, %c0_i32_1 : i32, i32, i32, i32
  }
  func.func @transform_25(%arg0: i32) -> (i32, i32, i32, i32) {
    %c0_i32 = arith.constant 0 : i32
    %c0_i32_0 = arith.constant 0 : i32
    %c0_i32_1 = arith.constant 0 : i32
    %c0_i32_2 = arith.constant 0 : i32
    return %arg0, %c0_i32, %c0_i32_0, %c0_i32_1 : i32, i32, i32, i32
  }
  func.func @transform_26(%arg0: i32) -> (i32, i32, i32, i32) {
    %c0_i32 = arith.constant 0 : i32
    %c0_i32_0 = arith.constant 0 : i32
    %c0_i32_1 = arith.constant 0 : i32
    %c0_i32_2 = arith.constant 0 : i32
    return %arg0, %c0_i32, %c0_i32_0, %c0_i32_1 : i32, i32, i32, i32
  }
  func.func @transform_27(%arg0: i32) -> (i32, i32, i32, i32) {
    %c0_i32 = arith.constant 0 : i32
    %c0_i32_0 = arith.constant 0 : i32
    %c0_i32_1 = arith.constant 0 : i32
    %c0_i32_2 = arith.constant 0 : i32
    return %arg0, %c0_i32, %c0_i32_0, %c0_i32_1 : i32, i32, i32, i32
  }
  func.func @transform_28(%arg0: i32) -> (i32, i32, i32, i32) {
    %c0_i32 = arith.constant 0 : i32
    %c0_i32_0 = arith.constant 0 : i32
    %c0_i32_1 = arith.constant 0 : i32
    %c0_i32_2 = arith.constant 0 : i32
    return %arg0, %c0_i32, %c0_i32_0, %c0_i32_1 : i32, i32, i32, i32
  }
  func.func @transform_29(%arg0: i32) -> (i32, i32, i32) {
    %c0_i32 = arith.constant 0 : i32
    %c0_i32_0 = arith.constant 0 : i32
    %c0_i32_1 = arith.constant 0 : i32
    return %arg0, %c0_i32, %c0_i32_0 : i32, i32, i32
  }
  func.func @transform_30(%arg0: i32) -> (i32, i32, i32) {
    %c0_i32 = arith.constant 0 : i32
    %c0_i32_0 = arith.constant 0 : i32
    %c0_i32_1 = arith.constant 0 : i32
    return %arg0, %c0_i32, %c0_i32_0 : i32, i32, i32
  }
  func.func @transform_31(%arg0: i32) -> (i32, i32, i32) {
    %c0_i32 = arith.constant 0 : i32
    %c0_i32_0 = arith.constant 0 : i32
    %c0_i32_1 = arith.constant 0 : i32
    return %arg0, %c0_i32, %c0_i32_0 : i32, i32, i32
  }
}

</mosaic_0001>

<llo_original>
// kernel: fwd.1
$region0: #{fwd.1}
  #allocation0 [shape = 'u32[]', space=smem, size = 0x4, offset = 0x4, fixed_abs, tag = 'smem constant byte address 0x4 - core index']
  #allocation1 [shape = 'u32[144,128]{1,0:T(1,128)}', space=vmem, size = 0x12000, scoped, tag = 'internal scratch']
  %s0 = inlined_call_operand.smem [shape: u32[32], index: -1, kind: input, shape index: {}]
  %s1 = sld [smem:[%s0]]
  %s2 = scalar_lea.smem %s0, 1
  %s3 = sld [smem:[%s2]]
  %s4 = scalar_lea.smem %s0, 2
  %s5 = sld [smem:[%s4]]
  %s6 = scalar_lea.smem %s0, 3
  %s7 = sld [smem:[%s6]]
  %s8 = scalar_lea.smem %s0, 4
  %s9 = sld [smem:[%s8]]
  %s10 = scalar_lea.smem %s0, 5
  %s11 = sld [smem:[%s10]]
  %s12 = scalar_lea.smem %s0, 6
  %s13 = sld [smem:[%s12]]
  %s14 = scalar_lea.smem %s0, 7
  %s15 = sld [smem:[%s14]]
  %s16 = scalar_lea.smem %s0, 8
  %s17 = sld [smem:[%s16]]
  %s18 = scalar_lea.smem %s0, 9
  %s19 = sld [smem:[%s18]]
  %s20 = scalar_lea.smem %s0, 10
  %s21 = sld [smem:[%s20]]
  %s22 = scalar_lea.smem %s0, 11
  %s23 = sld [smem:[%s22]]
  %s24 = scalar_lea.smem %s0, 12
  %s25 = sld [smem:[%s24]]
  %s26 = scalar_lea.smem %s0, 13
  %s27 = sld [smem:[%s26]]
  %s28 = scalar_lea.smem %s0, 14
  %s29 = sld [smem:[%s28]]
  %s30 = scalar_lea.smem %s0, 15
  %s31 = sld [smem:[%s30]]
  %s32 = scalar_lea.smem %s0, 16
  %s33 = sld [smem:[%s32]]
  %s34 = scalar_lea.smem %s0, 17
  %s35 = sld [smem:[%s34]]
  %s36 = scalar_lea.smem %s0, 18
  %s37 = sld [smem:[%s36]]
  %s38 = scalar_lea.smem %s0, 19
  %s39 = sld [smem:[%s38]]
  %s40 = scalar_lea.smem %s0, 20
  %s41 = sld [smem:[%s40]]
  %s42 = scalar_lea.smem %s0, 21
  %s43 = sld [smem:[%s42]]
  %s44 = scalar_lea.smem %s0, 22
  %s45 = sld [smem:[%s44]]
  %s46 = scalar_lea.smem %s0, 23
  %s47 = sld [smem:[%s46]]
  %s48 = scalar_lea.smem %s0, 24
  %s49 = sld [smem:[%s48]]
  %s50 = scalar_lea.smem %s0, 25
  %s51 = sld [smem:[%s50]]
  %s52 = scalar_lea.smem %s0, 26
  %s53 = sld [smem:[%s52]]
  %s54 = scalar_lea.smem %s0, 27
  %s55 = sld [smem:[%s54]]
  %s56 = scalar_lea.smem %s0, 28
  %s57 = sld [smem:[%s56]]
  %s58 = scalar_lea.smem %s0, 29
  %s59 = sld [smem:[%s58]]
  %s60 = scalar_lea.smem %s0, 30
  %s61 = sld [smem:[%s60]]
  %s62 = scalar_lea.smem %s0, 31
  %s63 = sld [smem:[%s62]]
  %s64 = sld [smem:[#allocation0]]
  $region134: #{fwd.1} parent=0
    _
  %s66 = ssub.s32 1, %s64
  %s67 = scalar_select 0, %s66, %s64
  $region1: #{fwd.1} parent=0
    #allocation2 [shape = 'u8[1024]{0}', space=vmem, size = 0x400, scoped, tag = 'output window, operand 0, single buffered']
    #allocation3 [shape = 's32[1]{0}', space=sflag, size = 0x4, scoped, tag = 'scoped memory for fwd.1']
    %68 = vsyncpa [#allocation3], 0
    // Predicated region
    $region2: #{fwd.1} parent=1 // pred_check
      _
    $region3: #{fwd.1} parent=1 // pred_check_branch
      %70 = sbr.rel (0) target = $region5
    $region4: #{fwd.1} parent=1 // pred_region
      _
    $region5: #{fwd.1} parent=1 // pred_fallthru
      _
    // Predicated region
    $region6: #{fwd.1} parent=1 // pred_check
      _
    $region7: #{fwd.1} parent=1 // pred_check_branch
      %72 = sbr.rel (0) target = $region9
    $region8: #{fwd.1} parent=1 // pred_region
      _
    $region9: #{fwd.1} parent=1 // pred_fallthru
      _
    // Predicated region
    $region10: #{fwd.1} parent=1 // pred_check
      _
    $region11: #{fwd.1} parent=1 // pred_check_branch
      %74 = sbr.rel (0) target = $region13
    $region12: #{fwd.1} parent=1 // pred_region
      _
    $region13: #{fwd.1} parent=1 // pred_fallthru
      _
    // Predicated region
    $region14: #{fwd.1} parent=1 // pred_check
      _
    $region15: #{fwd.1} parent=1 // pred_check_branch
      %76 = sbr.rel (0) target = $region17
    $region16: #{fwd.1} parent=1 // pred_region
      _
    $region17: #{fwd.1} parent=1 // pred_fallthru
      _
    // Predicated region
    $region18: #{fwd.1} parent=1 // pred_check
      _
    $region19: #{fwd.1} parent=1 // pred_check_branch
      %78 = sbr.rel (0) target = $region21
    $region20: #{fwd.1} parent=1 // pred_region
      _
    $region21: #{fwd.1} parent=1 // pred_fallthru
      _
    // Predicated region
    $region22: #{fwd.1} parent=1 // pred_check
      _
    $region23: #{fwd.1} parent=1 // pred_check_branch
      %80 = sbr.rel (0) target = $region25
    $region24: #{fwd.1} parent=1 // pred_region
      _
    $region25: #{fwd.1} parent=1 // pred_fallthru
      _
    // Predicated region
    $region26: #{fwd.1} parent=1 // pred_check
      _
    $region27: #{fwd.1} parent=1 // pred_check_branch
      %82 = sbr.rel (0) target = $region29
    $region28: #{fwd.1} parent=1 // pred_region
      _
    $region29: #{fwd.1} parent=1 // pred_fallthru
      _
    // Predicated region
    $region30: #{fwd.1} parent=1 // pred_check
      _
    $region31: #{fwd.1} parent=1 // pred_check_branch
      %84 = sbr.rel (0) target = $region33
    $region32: #{fwd.1} parent=1 // pred_region
      _
    $region33: #{fwd.1} parent=1 // pred_fallthru
      _
    // Predicated region
    $region34: #{fwd.1} parent=1 // pred_check
      _
    $region35: #{fwd.1} parent=1 // pred_check_branch
      %86 = sbr.rel (0) target = $region37
    $region36: #{fwd.1} parent=1 // pred_region
      _
    $region37: #{fwd.1} parent=1 // pred_fallthru
      _
    // Predicated region
    $region38: #{fwd.1} parent=1 // pred_check
      _
    $region39: #{fwd.1} parent=1 // pred_check_branch
      %88 = sbr.rel (0) target = $region41
    $region40: #{fwd.1} parent=1 // pred_region
      _
    $region41: #{fwd.1} parent=1 // pred_fallthru
      _
    // Predicated region
    $region42: #{fwd.1} parent=1 // pred_check
      _
    $region43: #{fwd.1} parent=1 // pred_check_branch
      %90 = sbr.rel (0) target = $region45
    $region44: #{fwd.1} parent=1 // pred_region
      _
    $region45: #{fwd.1} parent=1 // pred_fallthru
      _
    // Predicated region
    $region46: #{fwd.1} parent=1 // pred_check
      _
    $region47: #{fwd.1} parent=1 // pred_check_branch
      %92 = sbr.rel (0) target = $region49
    $region48: #{fwd.1} parent=1 // pred_region
      _
    $region49: #{fwd.1} parent=1 // pred_fallthru
      _
    // Predicated region
    $region50: #{fwd.1} parent=1 // pred_check
      _
    $region51: #{fwd.1} parent=1 // pred_check_branch
      %94 = sbr.rel (0) target = $region53
    $region52: #{fwd.1} parent=1 // pred_region
      _
    $region53: #{fwd.1} parent=1 // pred_fallthru
      _
    // Predicated region
    $region54: #{fwd.1} parent=1 // pred_check
      _
    $region55: #{fwd.1} parent=1 // pred_check_branch
      %96 = sbr.rel (0) target = $region57
    $region56: #{fwd.1} parent=1 // pred_region
      _
    $region57: #{fwd.1} parent=1 // pred_fallthru
      _
    // Predicated region
    $region58: #{fwd.1} parent=1 // pred_check
      _
    $region59: #{fwd.1} parent=1 // pred_check_branch
      %98 = sbr.rel (0) target = $region61
    $region60: #{fwd.1} parent=1 // pred_region
      _
    $region61: #{fwd.1} parent=1 // pred_fallthru
      _
    // Predicated region
    $region62: #{fwd.1} parent=1 // pred_check
      _
    $region63: #{fwd.1} parent=1 // pred_check_branch
      %100 = sbr.rel (0) target = $region65
    $region64: #{fwd.1} parent=1 // pred_region
      _
    $region65: #{fwd.1} parent=1 // pred_fallthru
      _
    // Predicated region
    $region66: #{fwd.1} parent=1 // pred_check
      _
    $region67: #{fwd.1} parent=1 // pred_check_branch
      %102 = sbr.rel (0) target = $region69
    $region68: #{fwd.1} parent=1 // pred_region
      _
    $region69: #{fwd.1} parent=1 // pred_fallthru
      _
    // Predicated region
    $region70: #{fwd.1} parent=1 // pred_check
      _
    $region71: #{fwd.1} parent=1 // pred_check_branch
      %104 = sbr.rel (0) target = $region73
    $region72: #{fwd.1} parent=1 // pred_region
      _
    $region73: #{fwd.1} parent=1 // pred_fallthru
      _
    // Predicated region
    $region74: #{fwd.1} parent=1 // pred_check
      _
    $region75: #{fwd.1} parent=1 // pred_check_branch
      %106 = sbr.rel (0) target = $region77
    $region76: #{fwd.1} parent=1 // pred_region
      _
    $region77: #{fwd.1} parent=1 // pred_fallthru
      _
    // Predicated region
    $region78: #{fwd.1} parent=1 // pred_check
      _
    $region79: #{fwd.1} parent=1 // pred_check_branch
      %108 = sbr.rel (0) target = $region81
    $region80: #{fwd.1} parent=1 // pred_region
      _
    $region81: #{fwd.1} parent=1 // pred_fallthru
      _
    // Predicated region
    $region82: #{fwd.1} parent=1 // pred_check
      _
    $region83: #{fwd.1} parent=1 // pred_check_branch
      %110 = sbr.rel (0) target = $region85
    $region84: #{fwd.1} parent=1 // pred_region
      _
    $region85: #{fwd.1} parent=1 // pred_fallthru
      _
    // Predicated region
    $region86: #{fwd.1} parent=1 // pred_check
      _
    $region87: #{fwd.1} parent=1 // pred_check_branch
      %112 = sbr.rel (0) target = $region89
    $region88: #{fwd.1} parent=1 // pred_region
      _
    $region89: #{fwd.1} parent=1 // pred_fallthru
      _
    // Predicated region
    $region90: #{fwd.1} parent=1 // pred_check
      _
    $region91: #{fwd.1} parent=1 // pred_check_branch
      %114 = sbr.rel (0) target = $region93
    $region92: #{fwd.1} parent=1 // pred_region
      _
    $region93: #{fwd.1} parent=1 // pred_fallthru
      _
    // Predicated region
    $region94: #{fwd.1} parent=1 // pred_check
      _
    $region95: #{fwd.1} parent=1 // pred_check_branch
      %116 = sbr.rel (0) target = $region97
    $region96: #{fwd.1} parent=1 // pred_region
      _
    $region97: #{fwd.1} parent=1 // pred_fallthru
      _
    // Predicated region
    $region98: #{fwd.1} parent=1 // pred_check
      _
    $region99: #{fwd.1} parent=1 // pred_check_branch
      %118 = sbr.rel (0) target = $region101
    $region100: #{fwd.1} parent=1 // pred_region
      _
    $region101: #{fwd.1} parent=1 // pred_fallthru
      _
    // Predicated region
    $region102: #{fwd.1} parent=1 // pred_check
      _
    $region103: #{fwd.1} parent=1 // pred_check_branch
      %120 = sbr.rel (0) target = $region105
    $region104: #{fwd.1} parent=1 // pred_region
      _
    $region105: #{fwd.1} parent=1 // pred_fallthru
      _
    // Predicated region
    $region106: #{fwd.1} parent=1 // pred_check
      _
    $region107: #{fwd.1} parent=1 // pred_check_branch
      %122 = sbr.rel (0) target = $region109
    $region108: #{fwd.1} parent=1 // pred_region
      _
    $region109: #{fwd.1} parent=1 // pred_fallthru
      _
    // Predicated region
    $region110: #{fwd.1} parent=1 // pred_check
      _
    $region111: #{fwd.1} parent=1 // pred_check_branch
      %124 = sbr.rel (0) target = $region113
    $region112: #{fwd.1} parent=1 // pred_region
      _
    $region113: #{fwd.1} parent=1 // pred_fallthru
      _
    // Predicated region
    $region114: #{fwd.1} parent=1 // pred_check
      _
    $region115: #{fwd.1} parent=1 // pred_check_branch
      %126 = sbr.rel (0) target = $region117
    $region116: #{fwd.1} parent=1 // pred_region
      _
    $region117: #{fwd.1} parent=1 // pred_fallthru
      _
    // Predicated region
    $region118: #{fwd.1} parent=1 // pred_check
      _
    $region119: #{fwd.1} parent=1 // pred_check_branch
      %128 = sbr.rel (0) target = $region121
    $region120: #{fwd.1} parent=1 // pred_region
      _
    $region121: #{fwd.1} parent=1 // pred_fallthru
      _
    // Predicated region
    $region122: #{fwd.1} parent=1 // pred_check
      _
    $region123: #{fwd.1} parent=1 // pred_check_branch
      %130 = sbr.rel (0) target = $region125
    $region124: #{fwd.1} parent=1 // pred_region
      _
    $region125: #{fwd.1} parent=1 // pred_fallthru
      _
    %v131 = vld [vmem:[%s1] sm:$0x3]
    %v132 = vld [vmem:[%s3] sm:$0xff]
    %v133 = vld [vmem:[%s5] sm:$0x1]
    %v135 = vlaneseq
    %v136 = vshrl.u32 %v135, 7
    %v137 = vsub.s32 0, %v136
    %v138 = vrot.slane %v133, %v137
    %vm140 = vcmask 64512
    %v142 = vsel %vm140, %v131, 0
    %144 = vmatprep.subr.mxu0 0.0
    %145 = vmatpush1.msra.mxu0 0.0
    %146 = vmatprep.subr.mxu0 0.0
    %147 = vmatpush1.msra.mxu0 0.0
    %148 = vmatprep.subr.mxu0 0.0
    %149 = vmatpush1.msra.mxu0 0.0
    %150 = vmatprep.subr.mxu0 0.0
    %151 = vmatpush1.msra.mxu0 0.0
    %152 = vmatprep.subr.mxu0 0.0
    %153 = vmatpush1.msra.mxu0 0.0
    %154 = vmatprep.subr.mxu0 0.0
    %155 = vmatpush1.msra.mxu0 0.0
    %156 = vmatprep.subr.mxu0 0.0
    %157 = vmatpush1.msra.mxu0 0.0
    %158 = vmatprep.subr.mxu0 0.0
    %159 = vmatpush1.msra.mxu0 0.0
    %160 = vmatprep.subr.mxu0 0.0
    %161 = vmatpush1.msra.mxu0 0.0
    %162 = vmatprep.subr.mxu0 0.0
    %163 = vmatpush1.msra.mxu0 0.0
    %164 = vmatprep.subr.mxu0 0.0
    %165 = vmatpush1.msra.mxu0 0.0
    %166 = vmatprep.subr.mxu0 0.0
    %167 = vmatpush1.msra.mxu0 0.0
    %168 = vmatprep.subr.mxu0 0.0
    %169 = vmatpush1.msra.mxu0 0.0
    %170 = vmatprep.subr.mxu0 0.0
    %171 = vmatpush1.msra.mxu0 0.0
    %172 = vmatprep.subr.mxu0 0.0
    %173 = vmatpush1.msra.mxu0 0.0
    %174 = vmatprep.subr.mxu0 0.0
    %175 = vmatpush1.msra.mxu0 %v132
    %176 = vmatprep.subr.mxu0 0.0
    %177 = vmatpush2.msra.mxu0 0.0
    %178 = vmatprep.subr.mxu0 0.0
    %179 = vmatpush2.msra.mxu0 0.0
    %180 = vmatprep.subr.mxu0 0.0
    %181 = vmatpush2.msra.mxu0 0.0
    %182 = vmatprep.subr.mxu0 0.0
    %183 = vmatpush2.msra.mxu0 0.0
    %184 = vmatprep.subr.mxu0 0.0
    %185 = vmatpush2.msra.mxu0 0.0
    %186 = vmatprep.subr.mxu0 0.0
    %187 = vmatpush2.msra.mxu0 0.0
    %188 = vmatprep.subr.mxu0 0.0
    %189 = vmatpush2.msra.mxu0 0.0
    %190 = vmatprep.subr.mxu0 0.0
    %191 = vmatpush2.msra.mxu0 0.0
    %192 = vmatprep.subr.mxu0 0.0
    %193 = vmatpush2.msra.mxu0 0.0
    %194 = vmatprep.subr.mxu0 0.0
    %195 = vmatpush2.msra.mxu0 0.0
    %196 = vmatprep.subr.mxu0 0.0
    %197 = vmatpush2.msra.mxu0 0.0
    %198 = vmatprep.subr.mxu0 0.0
    %199 = vmatpush2.msra.mxu0 0.0
    %200 = vmatprep.subr.mxu0 0.0
    %201 = vmatpush2.msra.mxu0 0.0
    %202 = vmatprep.subr.mxu0 0.0
    %203 = vmatpush2.msra.mxu0 0.0
    %204 = vmatprep.subr.mxu0 0.0
    %205 = vmatpush2.msra.mxu0 0.0
    %206 = vmatprep.subr.mxu0 0.0
    %207 = vmatpush2.msra.mxu0 0.0
    %208 = vmatprep.mubr.f32.mxu0 0.0
    %209 = vmatmul.mubr.f32.gmra.mxu0 %v142
    %v210 = vpop.f32.mrf.mxu0
    %v211 = vadd.f32 %v138, %v210
    %v212 = vpop.f32.mrf.mxu0
    %213 = vdwg.mxu0
    %v214 = vld [vmem:[%s7] sm:$0xff]
    %v215 = vld [vmem:[%s7 + $0x8] sm:$0xff]
    %v216 = vld [vmem:[%s7 + $0x10] sm:$0xff]
    %v217 = vld [vmem:[%s7 + $0x18] sm:$0xff]
    %v218 = vld [vmem:[%s9] sm:$0x1]
    %v220 = vlaneseq
    %v221 = vshrl.u32 %v220, 7
    %v222 = vsub.s32 0, %v221
    %v223 = vrot.slane %v218, %v222
    %vm225 = vcmask 261120
    %v227 = vsel %vm225, %v211, 0
    %229 = vmatprep.subr.mxu0 0.0
    %230 = vmatpush1.msra.mxu0 0.0
    %231 = vmatprep.subr.mxu0 0.0
    %232 = vmatpush1.msra.mxu0 0.0
    %233 = vmatprep.subr.mxu0 0.0
    %234 = vmatpush1.msra.mxu0 0.0
    %235 = vmatprep.subr.mxu0 0.0
    %236 = vmatpush1.msra.mxu0 0.0
    %237 = vmatprep.subr.mxu0 0.0
    %238 = vmatpush1.msra.mxu0 0.0
    %239 = vmatprep.subr.mxu0 0.0
    %240 = vmatpush1.msra.mxu0 0.0
    %241 = vmatprep.subr.mxu0 0.0
    %242 = vmatpush1.msra.mxu0 0.0
    %243 = vmatprep.subr.mxu0 0.0
    %244 = vmatpush1.msra.mxu0 0.0
    %245 = vmatprep.subr.mxu0 0.0
    %246 = vmatpush1.msra.mxu0 0.0
    %247 = vmatprep.subr.mxu0 0.0
    %248 = vmatpush1.msra.mxu0 0.0
    %249 = vmatprep.subr.mxu0 0.0
    %250 = vmatpush1.msra.mxu0 0.0
    %251 = vmatprep.subr.mxu0 0.0
    %252 = vmatpush1.msra.mxu0 0.0
    %253 = vmatprep.subr.mxu0 0.0
    %254 = vmatpush1.msra.mxu0 %v217
    %255 = vmatprep.subr.mxu0 0.0
    %256 = vmatpush1.msra.mxu0 %v216
    %257 = vmatprep.subr.mxu0 0.0
    %258 = vmatpush1.msra.mxu0 %v215
    %259 = vmatprep.subr.mxu0 0.0
    %260 = vmatpush1.msra.mxu0 %v214
    %261 = vmatprep.subr.mxu0 0.0
    %262 = vmatpush2.msra.mxu0 0.0
    %263 = vmatprep.subr.mxu0 0.0
    %264 = vmatpush2.msra.mxu0 0.0
    %265 = vmatprep.subr.mxu0 0.0
    %266 = vmatpush2.msra.mxu0 0.0
    %267 = vmatprep.subr.mxu0 0.0
    %268 = vmatpush2.msra.mxu0 0.0
    %269 = vmatprep.subr.mxu0 0.0
    %270 = vmatpush2.msra.mxu0 0.0
    %271 = vmatprep.subr.mxu0 0.0
    %272 = vmatpush2.msra.mxu0 0.0
    %273 = vmatprep.subr.mxu0 0.0
    %274 = vmatpush2.msra.mxu0 0.0
    %275 = vmatprep.subr.mxu0 0.0
    %276 = vmatpush2.msra.mxu0 0.0
    %277 = vmatprep.subr.mxu0 0.0
    %278 = vmatpush2.msra.mxu0 0.0
    %279 = vmatprep.subr.mxu0 0.0
    %280 = vmatpush2.msra.mxu0 0.0
    %281 = vmatprep.subr.mxu0 0.0
    %282 = vmatpush2.msra.mxu0 0.0
    %283 = vmatprep.subr.mxu0 0.0
    %284 = vmatpush2.msra.mxu0 0.0
    %285 = vmatprep.subr.mxu0 0.0
    %286 = vmatpush2.msra.mxu0 0.0
    %287 = vmatprep.subr.mxu0 0.0
    %288 = vmatpush2.msra.mxu0 0.0
    %289 = vmatprep.subr.mxu0 0.0
    %290 = vmatpush2.msra.mxu0 0.0
    %291 = vmatprep.subr.mxu0 0.0
    %292 = vmatpush2.msra.mxu0 0.0
    %293 = vmatprep.mubr.f32.mxu0 0.0
    %294 = vmatmul.mubr.f32.gmra.mxu0 %v227
    %v295 = vpop.f32.mrf.mxu0
    %v296 = vadd.f32 %v223, %v295
    %v297 = vpop.f32.mrf.mxu0
    %298 = vdwg.mxu0
    %v299 = vld [vmem:[%s11] sm:$0x1]
    %v300 = vld [vmem:[%s13] sm:$0x1]
    %v301 = vsub.f32 1.0, %v299
    %v303 = vlaneseq
    %v304 = vshrl.u32 %v303, 7
    %v305 = vsub.s32 0, %v304
    %v306 = vrot.slane %v300, %v305
    %v308 = vmul.f32 %v306, %v296
    %v309 = vxor.u32 %v308, 2147483648
    %v310 = vmul.f32 %v309, 1.442695
    %v311 = vpow.pop %v310
    %v312 = vadd.f32 %v311, 1.0
    %v313 = vrcp.pop %v312
    %v314 = vmul.f32 1.0, %v313
    %v316 = vlaneseq
    %v317 = vshrl.u32 %v316, 7
    %v318 = vsub.s32 0, %v317
    %v319 = vrot.slane %v301, %v318
    %v321 = vmul.f32 %v319, %v314
    %v323 = vlaneseq
    %v324 = vshrl.u32 %v323, 7
    %v325 = vsub.s32 0, %v324
    %v326 = vrot.slane %v299, %v325
    %v328 = vadd.f32 %v326, %v321
    %v329 = vmul.f32 %v328, %v296
    %v330 = vld [vmem:[%s15] sm:$0xff]
    %v331 = vld [vmem:[%s15 + $0x8] sm:$0xff]
    %v332 = vld [vmem:[%s15 + $0x10] sm:$0xff]
    %v333 = vld [vmem:[%s15 + $0x18] sm:$0xff]
    %v334 = vld [vmem:[%s17] sm:$0x1]
    %v336 = vlaneseq
    %v337 = vshrl.u32 %v336, 7
    %v338 = vsub.s32 0, %v337
    %v339 = vrot.slane %v334, %v338
    %341 = vmatprep.subr.mxu0 0.0
    %342 = vmatpush1.msra.mxu0 0.0
    %343 = vmatprep.subr.mxu0 0.0
    %344 = vmatpush1.msra.mxu0 0.0
    %345 = vmatprep.subr.mxu0 0.0
    %346 = vmatpush1.msra.mxu0 0.0
    %347 = vmatprep.subr.mxu0 0.0
    %348 = vmatpush1.msra.mxu0 0.0
    %349 = vmatprep.subr.mxu0 0.0
    %350 = vmatpush1.msra.mxu0 0.0
    %351 = vmatprep.subr.mxu0 0.0
    %352 = vmatpush1.msra.mxu0 0.0
    %353 = vmatprep.subr.mxu0 0.0
    %354 = vmatpush1.msra.mxu0 0.0
    %355 = vmatprep.subr.mxu0 0.0
    %356 = vmatpush1.msra.mxu0 0.0
    %357 = vmatprep.subr.mxu0 0.0
    %358 = vmatpush1.msra.mxu0 0.0
    %359 = vmatprep.subr.mxu0 0.0
    %360 = vmatpush1.msra.mxu0 0.0
    %361 = vmatprep.subr.mxu0 0.0
    %362 = vmatpush1.msra.mxu0 0.0
    %363 = vmatprep.subr.mxu0 0.0
    %364 = vmatpush1.msra.mxu0 0.0
    %365 = vmatprep.subr.mxu0 0.0
    %366 = vmatpush1.msra.mxu0 %v333
    %367 = vmatprep.subr.mxu0 0.0
    %368 = vmatpush1.msra.mxu0 %v332
    %369 = vmatprep.subr.mxu0 0.0
    %370 = vmatpush1.msra.mxu0 %v331
    %371 = vmatprep.subr.mxu0 0.0
    %372 = vmatpush1.msra.mxu0 %v330
    %373 = vmatprep.subr.mxu0 0.0
    %374 = vmatpush2.msra.mxu0 0.0
    %375 = vmatprep.subr.mxu0 0.0
    %376 = vmatpush2.msra.mxu0 0.0
    %377 = vmatprep.subr.mxu0 0.0
    %378 = vmatpush2.msra.mxu0 0.0
    %379 = vmatprep.subr.mxu0 0.0
    %380 = vmatpush2.msra.mxu0 0.0
    %381 = vmatprep.subr.mxu0 0.0
    %382 = vmatpush2.msra.mxu0 0.0
    %383 = vmatprep.subr.mxu0 0.0
    %384 = vmatpush2.msra.mxu0 0.0
    %385 = vmatprep.subr.mxu0 0.0
    %386 = vmatpush2.msra.mxu0 0.0
    %387 = vmatprep.subr.mxu0 0.0
    %388 = vmatpush2.msra.mxu0 0.0
    %389 = vmatprep.subr.mxu0 0.0
    %390 = vmatpush2.msra.mxu0 0.0
    %391 = vmatprep.subr.mxu0 0.0
    %392 = vmatpush2.msra.mxu0 0.0
    %393 = vmatprep.subr.mxu0 0.0
    %394 = vmatpush2.msra.mxu0 0.0
    %395 = vmatprep.subr.mxu0 0.0
    %396 = vmatpush2.msra.mxu0 0.0
    %397 = vmatprep.subr.mxu0 0.0
    %398 = vmatpush2.msra.mxu0 0.0
    %399 = vmatprep.subr.mxu0 0.0
    %400 = vmatpush2.msra.mxu0 0.0
    %401 = vmatprep.subr.mxu0 0.0
    %402 = vmatpush2.msra.mxu0 0.0
    %403 = vmatprep.subr.mxu0 0.0
    %404 = vmatpush2.msra.mxu0 0.0
    %405 = vmatprep.mubr.f32.mxu0 0.0
    %406 = vmatmul.mubr.f32.gmra.mxu0 %v227
    %v407 = vpop.f32.mrf.mxu0
    %v408 = vadd.f32 %v339, %v407
    %v409 = vpop.f32.mrf.mxu0
    %410 = vdwg.mxu0
    %v411 = vld [vmem:[%s19] sm:$0xff]
    %v412 = vld [vmem:[%s19 + $0x8] sm:$0xff]
    %v413 = vld [vmem:[%s19 + $0x10] sm:$0xff]
    %v414 = vld [vmem:[%s19 + $0x18] sm:$0xff]
    %v415 = vld [vmem:[%s21] sm:$0x1]
    %v417 = vlaneseq
    %v418 = vshrl.u32 %v417, 7
    %v419 = vsub.s32 0, %v418
    %v420 = vrot.slane %v415, %v419
    %v423 = vsel %vm225, %v329, 0
    %425 = vmatprep.subr.mxu0 0.0
    %426 = vmatpush1.msra.mxu0 0.0
    %427 = vmatprep.subr.mxu0 0.0
    %428 = vmatpush1.msra.mxu0 0.0
    %429 = vmatprep.subr.mxu0 0.0
    %430 = vmatpush1.msra.mxu0 0.0
    %431 = vmatprep.subr.mxu0 0.0
    %432 = vmatpush1.msra.mxu0 0.0
    %433 = vmatprep.subr.mxu0 0.0
    %434 = vmatpush1.msra.mxu0 0.0
    %435 = vmatprep.subr.mxu0 0.0
    %436 = vmatpush1.msra.mxu0 0.0
    %437 = vmatprep.subr.mxu0 0.0
    %438 = vmatpush1.msra.mxu0 0.0
    %439 = vmatprep.subr.mxu0 0.0
    %440 = vmatpush1.msra.mxu0 0.0
    %441 = vmatprep.subr.mxu0 0.0
    %442 = vmatpush1.msra.mxu0 0.0
    %443 = vmatprep.subr.mxu0 0.0
    %444 = vmatpush1.msra.mxu0 0.0
    %445 = vmatprep.subr.mxu0 0.0
    %446 = vmatpush1.msra.mxu0 0.0
    %447 = vmatprep.subr.mxu0 0.0
    %448 = vmatpush1.msra.mxu0 0.0
    %449 = vmatprep.subr.mxu0 0.0
    %450 = vmatpush1.msra.mxu0 %v414
    %451 = vmatprep.subr.mxu0 0.0
    %452 = vmatpush1.msra.mxu0 %v413
    %453 = vmatprep.subr.mxu0 0.0
    %454 = vmatpush1.msra.mxu0 %v412
    %455 = vmatprep.subr.mxu0 0.0
    %456 = vmatpush1.msra.mxu0 %v411
    %457 = vmatprep.subr.mxu0 0.0
    %458 = vmatpush2.msra.mxu0 0.0
    %459 = vmatprep.subr.mxu0 0.0
    %460 = vmatpush2.msra.mxu0 0.0
    %461 = vmatprep.subr.mxu0 0.0
    %462 = vmatpush2.msra.mxu0 0.0
    %463 = vmatprep.subr.mxu0 0.0
    %464 = vmatpush2.msra.mxu0 0.0
    %465 = vmatprep.subr.mxu0 0.0
    %466 = vmatpush2.msra.mxu0 0.0
    %467 = vmatprep.subr.mxu0 0.0
    %468 = vmatpush2.msra.mxu0 0.0
    %469 = vmatprep.subr.mxu0 0.0
    %470 = vmatpush2.msra.mxu0 0.0
    %471 = vmatprep.subr.mxu0 0.0
    %472 = vmatpush2.msra.mxu0 0.0
    %473 = vmatprep.subr.mxu0 0.0
    %474 = vmatpush2.msra.mxu0 0.0
    %475 = vmatprep.subr.mxu0 0.0
    %476 = vmatpush2.msra.mxu0 0.0
    %477 = vmatprep.subr.mxu0 0.0
    %478 = vmatpush2.msra.mxu0 0.0
    %479 = vmatprep.subr.mxu0 0.0
    %480 = vmatpush2.msra.mxu0 0.0
    %481 = vmatprep.subr.mxu0 0.0
    %482 = vmatpush2.msra.mxu0 0.0
    %483 = vmatprep.subr.mxu0 0.0
    %484 = vmatpush2.msra.mxu0 0.0
    %485 = vmatprep.subr.mxu0 0.0
    %486 = vmatpush2.msra.mxu0 0.0
    %487 = vmatprep.subr.mxu0 0.0
    %488 = vmatpush2.msra.mxu0 0.0
    %489 = vmatprep.mubr.f32.mxu0 0.0
    %490 = vmatmul.mubr.f32.gmra.mxu0 %v423
    %v491 = vpop.f32.mrf.mxu0
    %v492 = vadd.f32 %v420, %v491
    %v493 = vpop.f32.mrf.mxu0
    %494 = vdwg.mxu0
    %v495 = vadd.f32 %v492, %v408
    %v496 = vld [vmem:[%s23] sm:$0x1]
    %v497 = vld [vmem:[%s25] sm:$0x1]
    %v498 = vsub.f32 1.0, %v496
    %v500 = vlaneseq
    %v501 = vshrl.u32 %v500, 7
    %v502 = vsub.s32 0, %v501
    %v503 = vrot.slane %v497, %v502
    %v505 = vmul.f32 %v503, %v495
    %v506 = vxor.u32 %v505, 2147483648
    %v507 = vmul.f32 %v506, 1.442695
    %v508 = vpow.pop %v507
    %v509 = vadd.f32 %v508, 1.0
    %v510 = vrcp.pop %v509
    %v511 = vmul.f32 1.0, %v510
    %v513 = vlaneseq
    %v514 = vshrl.u32 %v513, 7
    %v515 = vsub.s32 0, %v514
    %v516 = vrot.slane %v498, %v515
    %v518 = vmul.f32 %v516, %v511
    %v520 = vlaneseq
    %v521 = vshrl.u32 %v520, 7
    %v522 = vsub.s32 0, %v521
    %v523 = vrot.slane %v496, %v522
    %v525 = vadd.f32 %v523, %v518
    %v526 = vmul.f32 %v525, %v495
    %v527 = vld [vmem:[%s27] sm:$0xff]
    %v528 = vld [vmem:[%s27 + $0x8] sm:$0xff]
    %v529 = vld [vmem:[%s27 + $0x10] sm:$0xff]
    %v530 = vld [vmem:[%s27 + $0x18] sm:$0xff]
    %v531 = vld [vmem:[%s29] sm:$0x1]
    %v533 = vlaneseq
    %v534 = vshrl.u32 %v533, 7
    %v535 = vsub.s32 0, %v534
    %v536 = vrot.slane %v531, %v535
    %v539 = vsel %vm225, %v526, 0
    %541 = vmatprep.subr.mxu0 0.0
    %542 = vmatpush1.msra.mxu0 0.0
    %543 = vmatprep.subr.mxu0 0.0
    %544 = vmatpush1.msra.mxu0 0.0
    %545 = vmatprep.subr.mxu0 0.0
    %546 = vmatpush1.msra.mxu0 0.0
    %547 = vmatprep.subr.mxu0 0.0
    %548 = vmatpush1.msra.mxu0 0.0
    %549 = vmatprep.subr.mxu0 0.0
    %550 = vmatpush1.msra.mxu0 0.0
    %551 = vmatprep.subr.mxu0 0.0
    %552 = vmatpush1.msra.mxu0 0.0
    %553 = vmatprep.subr.mxu0 0.0
    %554 = vmatpush1.msra.mxu0 0.0
    %555 = vmatprep.subr.mxu0 0.0
    %556 = vmatpush1.msra.mxu0 0.0
    %557 = vmatprep.subr.mxu0 0.0
    %558 = vmatpush1.msra.mxu0 0.0
    %559 = vmatprep.subr.mxu0 0.0
    %560 = vmatpush1.msra.mxu0 0.0
    %561 = vmatprep.subr.mxu0 0.0
    %562 = vmatpush1.msra.mxu0 0.0
    %563 = vmatprep.subr.mxu0 0.0
    %564 = vmatpush1.msra.mxu0 0.0
    %565 = vmatprep.subr.mxu0 0.0
    %566 = vmatpush1.msra.mxu0 %v530
    %567 = vmatprep.subr.mxu0 0.0
    %568 = vmatpush1.msra.mxu0 %v529
    %569 = vmatprep.subr.mxu0 0.0
    %570 = vmatpush1.msra.mxu0 %v528
    %571 = vmatprep.subr.mxu0 0.0
    %572 = vmatpush1.msra.mxu0 %v527
    %573 = vmatprep.subr.mxu0 0.0
    %574 = vmatpush2.msra.mxu0 0.0
    %575 = vmatprep.subr.mxu0 0.0
    %576 = vmatpush2.msra.mxu0 0.0
    %577 = vmatprep.subr.mxu0 0.0
    %578 = vmatpush2.msra.mxu0 0.0
    %579 = vmatprep.subr.mxu0 0.0
    %580 = vmatpush2.msra.mxu0 0.0
    %581 = vmatprep.subr.mxu0 0.0
    %582 = vmatpush2.msra.mxu0 0.0
    %583 = vmatprep.subr.mxu0 0.0
    %584 = vmatpush2.msra.mxu0 0.0
    %585 = vmatprep.subr.mxu0 0.0
    %586 = vmatpush2.msra.mxu0 0.0
    %587 = vmatprep.subr.mxu0 0.0
    %588 = vmatpush2.msra.mxu0 0.0
    %589 = vmatprep.subr.mxu0 0.0
    %590 = vmatpush2.msra.mxu0 0.0
    %591 = vmatprep.subr.mxu0 0.0
    %592 = vmatpush2.msra.mxu0 0.0
    %593 = vmatprep.subr.mxu0 0.0
    %594 = vmatpush2.msra.mxu0 0.0
    %595 = vmatprep.subr.mxu0 0.0
    %596 = vmatpush2.msra.mxu0 0.0
    %597 = vmatprep.subr.mxu0 0.0
    %598 = vmatpush2.msra.mxu0 0.0
    %599 = vmatprep.subr.mxu0 0.0
    %600 = vmatpush2.msra.mxu0 0.0
    %601 = vmatprep.subr.mxu0 0.0
    %602 = vmatpush2.msra.mxu0 0.0
    %603 = vmatprep.subr.mxu0 0.0
    %604 = vmatpush2.msra.mxu0 0.0
    %605 = vmatprep.mubr.f32.mxu0 0.0
    %606 = vmatmul.mubr.f32.gmra.mxu0 %v539
    %v607 = vpop.f32.mrf.mxu0
    %v608 = vadd.f32 %v536, %v607
    %v609 = vpop.f32.mrf.mxu0
    %610 = vdwg.mxu0
    %612 = vrot.lane.b32.xlu0 %v608, 112
    %v613 = vpop.permute.xlu0 %612
    %615 = vrot.lane.b32.xlu0 %v608, 96
    %v616 = vpop.permute.xlu0 %615
    %618 = vrot.lane.b32.xlu0 %v608, 80
    %v619 = vpop.permute.xlu0 %618
    %v621 = vcombine.low %v608, %v616
    %v623 = vunpack.c.l.s4 1983009808
    %v624 = vunpack.c.0.s8 %v623
    %v625 = vlaneseq
    %v626 = vshrl.u32 %v625, 7
    %v627 = vsub.s32 %v624, %v626
    %v628 = vrot.slane %v621, %v627
    %v629 = vcombine.low %v613, %v619
    %v631 = vunpack.c.l.s4 1983009808
    %v632 = vunpack.c.0.s8 %v631
    %v633 = vlaneseq
    %v634 = vshrl.u32 %v633, 7
    %v635 = vsub.s32 %v632, %v634
    %v636 = vrot.slane %v629, %v635
    %v637 = vcombine.low %v628, %v636
    %v639 = vunpack.c.l.s4 1934713408
    %v640 = vunpack.c.0.s8 %v639
    %v641 = vlaneseq
    %v642 = vshrl.u32 %v641, 7
    %v643 = vsub.s32 %v640, %v642
    %v644 = vrot.slane %v637, %v643
    %v645 = vcombine.high %v644, 0.0
    %v646 = vld [vmem:[%s31] sm:$0xff]
    %v647 = vld [vmem:[%s31 + $0x8] sm:$0xff]
    %v648 = vld [vmem:[%s33] sm:$0x1]
    %v650 = vlaneseq
    %v651 = vshrl.u32 %v650, 7
    %v652 = vsub.s32 0, %v651
    %v653 = vrot.slane %v648, %v652
    %v656 = vcombine.low %v644, %v645
    %v657 = vcombine.low %v653, %v653
    %vm659 = vcmask 130048
    %v660 = vsel %vm659, %v656, 0
    %662 = vmatprep.subr.mxu0 0.0
    %663 = vmatpush1.msra.mxu0 0.0
    %664 = vmatprep.subr.mxu0 0.0
    %665 = vmatpush1.msra.mxu0 0.0
    %666 = vmatprep.subr.mxu0 0.0
    %667 = vmatpush1.msra.mxu0 0.0
    %668 = vmatprep.subr.mxu0 0.0
    %669 = vmatpush1.msra.mxu0 0.0
    %670 = vmatprep.subr.mxu0 0.0
    %671 = vmatpush1.msra.mxu0 0.0
    %672 = vmatprep.subr.mxu0 0.0
    %673 = vmatpush1.msra.mxu0 0.0
    %674 = vmatprep.subr.mxu0 0.0
    %675 = vmatpush1.msra.mxu0 0.0
    %676 = vmatprep.subr.mxu0 0.0
    %677 = vmatpush1.msra.mxu0 0.0
    %678 = vmatprep.subr.mxu0 0.0
    %679 = vmatpush1.msra.mxu0 0.0
    %680 = vmatprep.subr.mxu0 0.0
    %681 = vmatpush1.msra.mxu0 0.0
    %682 = vmatprep.subr.mxu0 0.0
    %683 = vmatpush1.msra.mxu0 0.0
    %684 = vmatprep.subr.mxu0 0.0
    %685 = vmatpush1.msra.mxu0 0.0
    %686 = vmatprep.subr.mxu0 0.0
    %687 = vmatpush1.msra.mxu0 0.0
    %688 = vmatprep.subr.mxu0 0.0
    %689 = vmatpush1.msra.mxu0 0.0
    %690 = vmatprep.subr.mxu0 0.0
    %691 = vmatpush1.msra.mxu0 %v647
    %692 = vmatprep.subr.mxu0 0.0
    %693 = vmatpush1.msra.mxu0 %v646
    %694 = vmatprep.subr.mxu0 0.0
    %695 = vmatpush2.msra.mxu0 0.0
    %696 = vmatprep.subr.mxu0 0.0
    %697 = vmatpush2.msra.mxu0 0.0
    %698 = vmatprep.subr.mxu0 0.0
    %699 = vmatpush2.msra.mxu0 0.0
    %700 = vmatprep.subr.mxu0 0.0
    %701 = vmatpush2.msra.mxu0 0.0
    %702 = vmatprep.subr.mxu0 0.0
    %703 = vmatpush2.msra.mxu0 0.0
    %704 = vmatprep.subr.mxu0 0.0
    %705 = vmatpush2.msra.mxu0 0.0
    %706 = vmatprep.subr.mxu0 0.0
    %707 = vmatpush2.msra.mxu0 0.0
    %708 = vmatprep.subr.mxu0 0.0
    %709 = vmatpush2.msra.mxu0 0.0
    %710 = vmatprep.subr.mxu0 0.0
    %711 = vmatpush2.msra.mxu0 0.0
    %712 = vmatprep.subr.mxu0 0.0
    %713 = vmatpush2.msra.mxu0 0.0
    %714 = vmatprep.subr.mxu0 0.0
    %715 = vmatpush2.msra.mxu0 0.0
    %716 = vmatprep.subr.mxu0 0.0
    %717 = vmatpush2.msra.mxu0 0.0
    %718 = vmatprep.subr.mxu0 0.0
    %719 = vmatpush2.msra.mxu0 0.0
    %720 = vmatprep.subr.mxu0 0.0
    %721 = vmatpush2.msra.mxu0 0.0
    %722 = vmatprep.subr.mxu0 0.0
    %723 = vmatpush2.msra.mxu0 0.0
    %724 = vmatprep.subr.mxu0 0.0
    %725 = vmatpush2.msra.mxu0 0.0
    %726 = vmatprep.mubr.f32.mxu0 0.0
    %727 = vmatmul.mubr.f32.gmra.mxu0 %v660
    %v728 = vpop.f32.mrf.mxu0
    %v729 = vadd.f32 %v657, %v728
    %v730 = vpop.f32.mrf.mxu0
    %731 = vdwg.mxu0
    %v733 = vcombine.high %v729, %v729
    %s734 = scalar_lea.vmem %s31, 16
    %v735 = vld [vmem:[%s734] sm:$0xff]
    %v736 = vld [vmem:[%s734 + $0x8] sm:$0xff]
    %s737 = scalar_lea.vmem %s33, 1
    %v738 = vld [vmem:[%s737] sm:$0x1]
    %v740 = vlaneseq
    %v741 = vshrl.u32 %v740, 7
    %v742 = vsub.s32 0, %v741
    %v743 = vrot.slane %v738, %v742
    %v744 = vcombine.low %v743, %v743
    %746 = vmatprep.subr.mxu0 0.0
    %747 = vmatpush1.msra.mxu0 0.0
    %748 = vmatprep.subr.mxu0 0.0
    %749 = vmatpush1.msra.mxu0 0.0
    %750 = vmatprep.subr.mxu0 0.0
    %751 = vmatpush1.msra.mxu0 0.0
    %752 = vmatprep.subr.mxu0 0.0
    %753 = vmatpush1.msra.mxu0 0.0
    %754 = vmatprep.subr.mxu0 0.0
    %755 = vmatpush1.msra.mxu0 0.0
    %756 = vmatprep.subr.mxu0 0.0
    %757 = vmatpush1.msra.mxu0 0.0
    %758 = vmatprep.subr.mxu0 0.0
    %759 = vmatpush1.msra.mxu0 0.0
    %760 = vmatprep.subr.mxu0 0.0
    %761 = vmatpush1.msra.mxu0 0.0
    %762 = vmatprep.subr.mxu0 0.0
    %763 = vmatpush1.msra.mxu0 0.0
    %764 = vmatprep.subr.mxu0 0.0
    %765 = vmatpush1.msra.mxu0 0.0
    %766 = vmatprep.subr.mxu0 0.0
    %767 = vmatpush1.msra.mxu0 0.0
    %768 = vmatprep.subr.mxu0 0.0
    %769 = vmatpush1.msra.mxu0 0.0
    %770 = vmatprep.subr.mxu0 0.0
    %771 = vmatpush1.msra.mxu0 0.0
    %772 = vmatprep.subr.mxu0 0.0
    %773 = vmatpush1.msra.mxu0 0.0
    %774 = vmatprep.subr.mxu0 0.0
    %775 = vmatpush1.msra.mxu0 %v736
    %776 = vmatprep.subr.mxu0 0.0
    %777 = vmatpush1.msra.mxu0 %v735
    %778 = vmatprep.subr.mxu0 0.0
    %779 = vmatpush2.msra.mxu0 0.0
    %780 = vmatprep.subr.mxu0 0.0
    %781 = vmatpush2.msra.mxu0 0.0
    %782 = vmatprep.subr.mxu0 0.0
    %783 = vmatpush2.msra.mxu0 0.0
    %784 = vmatprep.subr.mxu0 0.0
    %785 = vmatpush2.msra.mxu0 0.0
    %786 = vmatprep.subr.mxu0 0.0
    %787 = vmatpush2.msra.mxu0 0.0
    %788 = vmatprep.subr.mxu0 0.0
    %789 = vmatpush2.msra.mxu0 0.0
    %790 = vmatprep.subr.mxu0 0.0
    %791 = vmatpush2.msra.mxu0 0.0
    %792 = vmatprep.subr.mxu0 0.0
    %793 = vmatpush2.msra.mxu0 0.0
    %794 = vmatprep.subr.mxu0 0.0
    %795 = vmatpush2.msra.mxu0 0.0
    %796 = vmatprep.subr.mxu0 0.0
    %797 = vmatpush2.msra.mxu0 0.0
    %798 = vmatprep.subr.mxu0 0.0
    %799 = vmatpush2.msra.mxu0 0.0
    %800 = vmatprep.subr.mxu0 0.0
    %801 = vmatpush2.msra.mxu0 0.0
    %802 = vmatprep.subr.mxu0 0.0
    %803 = vmatpush2.msra.mxu0 0.0
    %804 = vmatprep.subr.mxu0 0.0
    %805 = vmatpush2.msra.mxu0 0.0
    %806 = vmatprep.subr.mxu0 0.0
    %807 = vmatpush2.msra.mxu0 0.0
    %808 = vmatprep.subr.mxu0 0.0
    %809 = vmatpush2.msra.mxu0 0.0
    %810 = vmatprep.mubr.f32.mxu0 0.0
    %811 = vmatmul.mubr.f32.gmra.mxu0 %v660
    %v812 = vpop.f32.mrf.mxu0
    %v813 = vadd.f32 %v744, %v812
    %v814 = vpop.f32.mrf.mxu0
    %815 = vdwg.mxu0
    %v817 = vcombine.high %v813, %v813
    %s818 = scalar_lea.vmem %s31, 32
    %v819 = vld [vmem:[%s818] sm:$0xff]
    %v820 = vld [vmem:[%s818 + $0x8] sm:$0xff]
    %s821 = scalar_lea.vmem %s33, 2
    %v822 = vld [vmem:[%s821] sm:$0x1]
    %v824 = vlaneseq
    %v825 = vshrl.u32 %v824, 7
    %v826 = vsub.s32 0, %v825
    %v827 = vrot.slane %v822, %v826
    %v828 = vcombine.low %v827, %v827
    %830 = vmatprep.subr.mxu0 0.0
    %831 = vmatpush1.msra.mxu0 0.0
    %832 = vmatprep.subr.mxu0 0.0
    %833 = vmatpush1.msra.mxu0 0.0
    %834 = vmatprep.subr.mxu0 0.0
    %835 = vmatpush1.msra.mxu0 0.0
    %836 = vmatprep.subr.mxu0 0.0
    %837 = vmatpush1.msra.mxu0 0.0
    %838 = vmatprep.subr.mxu0 0.0
    %839 = vmatpush1.msra.mxu0 0.0
    %840 = vmatprep.subr.mxu0 0.0
    %841 = vmatpush1.msra.mxu0 0.0
    %842 = vmatprep.subr.mxu0 0.0
    %843 = vmatpush1.msra.mxu0 0.0
    %844 = vmatprep.subr.mxu0 0.0
    %845 = vmatpush1.msra.mxu0 0.0
    %846 = vmatprep.subr.mxu0 0.0
    %847 = vmatpush1.msra.mxu0 0.0
    %848 = vmatprep.subr.mxu0 0.0
    %849 = vmatpush1.msra.mxu0 0.0
    %850 = vmatprep.subr.mxu0 0.0
    %851 = vmatpush1.msra.mxu0 0.0
    %852 = vmatprep.subr.mxu0 0.0
    %853 = vmatpush1.msra.mxu0 0.0
    %854 = vmatprep.subr.mxu0 0.0
    %855 = vmatpush1.msra.mxu0 0.0
    %856 = vmatprep.subr.mxu0 0.0
    %857 = vmatpush1.msra.mxu0 0.0
    %858 = vmatprep.subr.mxu0 0.0
    %859 = vmatpush1.msra.mxu0 %v820
    %860 = vmatprep.subr.mxu0 0.0
    %861 = vmatpush1.msra.mxu0 %v819
    %862 = vmatprep.subr.mxu0 0.0
    %863 = vmatpush2.msra.mxu0 0.0
    %864 = vmatprep.subr.mxu0 0.0
    %865 = vmatpush2.msra.mxu0 0.0
    %866 = vmatprep.subr.mxu0 0.0
    %867 = vmatpush2.msra.mxu0 0.0
    %868 = vmatprep.subr.mxu0 0.0
    %869 = vmatpush2.msra.mxu0 0.0
    %870 = vmatprep.subr.mxu0 0.0
    %871 = vmatpush2.msra.mxu0 0.0
    %872 = vmatprep.subr.mxu0 0.0
    %873 = vmatpush2.msra.mxu0 0.0
    %874 = vmatprep.subr.mxu0 0.0
    %875 = vmatpush2.msra.mxu0 0.0
    %876 = vmatprep.subr.mxu0 0.0
    %877 = vmatpush2.msra.mxu0 0.0
    %878 = vmatprep.subr.mxu0 0.0
    %879 = vmatpush2.msra.mxu0 0.0
    %880 = vmatprep.subr.mxu0 0.0
    %881 = vmatpush2.msra.mxu0 0.0
    %882 = vmatprep.subr.mxu0 0.0
    %883 = vmatpush2.msra.mxu0 0.0
    %884 = vmatprep.subr.mxu0 0.0
    %885 = vmatpush2.msra.mxu0 0.0
    %886 = vmatprep.subr.mxu0 0.0
    %887 = vmatpush2.msra.mxu0 0.0
    %888 = vmatprep.subr.mxu0 0.0
    %889 = vmatpush2.msra.mxu0 0.0
    %890 = vmatprep.subr.mxu0 0.0
    %891 = vmatpush2.msra.mxu0 0.0
    %892 = vmatprep.subr.mxu0 0.0
    %893 = vmatpush2.msra.mxu0 0.0
    %894 = vmatprep.mubr.f32.mxu0 0.0
    %895 = vmatmul.mubr.f32.gmra.mxu0 %v660
    %v896 = vpop.f32.mrf.mxu0
    %v897 = vadd.f32 %v828, %v896
    %v898 = vpop.f32.mrf.mxu0
    %899 = vdwg.mxu0
    %v901 = vcombine.high %v897, %v897
    %v902 = vsel %vm659, %v729, 0
    %v904 = vsel %vm659, %v813, 0
    %906 = vmatprep.subr.mxu0 0.0
    %907 = vmatpush1.xpose.msra.mxu0 0.0
    %908 = vmatprep.subr.mxu0 0.0
    %909 = vmatpush1.xpose.msra.mxu0 0.0
    %910 = vmatprep.subr.mxu0 0.0
    %911 = vmatpush1.xpose.msra.mxu0 0.0
    %912 = vmatprep.subr.mxu0 0.0
    %913 = vmatpush1.xpose.msra.mxu0 0.0
    %914 = vmatprep.subr.mxu0 0.0
    %915 = vmatpush1.xpose.msra.mxu0 0.0
    %916 = vmatprep.subr.mxu0 0.0
    %917 = vmatpush1.xpose.msra.mxu0 0.0
    %918 = vmatprep.subr.mxu0 0.0
    %919 = vmatpush1.xpose.msra.mxu0 0.0
    %920 = vmatprep.subr.mxu0 0.0
    %921 = vmatpush1.xpose.msra.mxu0 0.0
    %922 = vmatprep.subr.mxu0 0.0
    %923 = vmatpush1.xpose.msra.mxu0 0.0
    %924 = vmatprep.subr.mxu0 0.0
    %925 = vmatpush1.xpose.msra.mxu0 0.0
    %926 = vmatprep.subr.mxu0 0.0
    %927 = vmatpush1.xpose.msra.mxu0 0.0
    %928 = vmatprep.subr.mxu0 0.0
    %929 = vmatpush1.xpose.msra.mxu0 0.0
    %930 = vmatprep.subr.mxu0 0.0
    %931 = vmatpush1.xpose.msra.mxu0 0.0
    %932 = vmatprep.subr.mxu0 0.0
    %933 = vmatpush1.xpose.msra.mxu0 0.0
    %934 = vmatprep.subr.mxu0 0.0
    %935 = vmatpush1.xpose.msra.mxu0 0.0
    %936 = vmatprep.subr.mxu0 0.0
    %937 = vmatpush1.xpose.msra.mxu0 %v904
    %938 = vmatprep.subr.mxu0 0.0
    %939 = vmatpush2.xpose.msra.mxu0 0.0
    %940 = vmatprep.subr.mxu0 0.0
    %941 = vmatpush2.xpose.msra.mxu0 0.0
    %942 = vmatprep.subr.mxu0 0.0
    %943 = vmatpush2.xpose.msra.mxu0 0.0
    %944 = vmatprep.subr.mxu0 0.0
    %945 = vmatpush2.xpose.msra.mxu0 0.0
    %946 = vmatprep.subr.mxu0 0.0
    %947 = vmatpush2.xpose.msra.mxu0 0.0
    %948 = vmatprep.subr.mxu0 0.0
    %949 = vmatpush2.xpose.msra.mxu0 0.0
    %950 = vmatprep.subr.mxu0 0.0
    %951 = vmatpush2.xpose.msra.mxu0 0.0
    %952 = vmatprep.subr.mxu0 0.0
    %953 = vmatpush2.xpose.msra.mxu0 0.0
    %954 = vmatprep.subr.mxu0 0.0
    %955 = vmatpush2.xpose.msra.mxu0 0.0
    %956 = vmatprep.subr.mxu0 0.0
    %957 = vmatpush2.xpose.msra.mxu0 0.0
    %958 = vmatprep.subr.mxu0 0.0
    %959 = vmatpush2.xpose.msra.mxu0 0.0
    %960 = vmatprep.subr.mxu0 0.0
    %961 = vmatpush2.xpose.msra.mxu0 0.0
    %962 = vmatprep.subr.mxu0 0.0
    %963 = vmatpush2.xpose.msra.mxu0 0.0
    %964 = vmatprep.subr.mxu0 0.0
    %965 = vmatpush2.xpose.msra.mxu0 0.0
    %966 = vmatprep.subr.mxu0 0.0
    %967 = vmatpush2.xpose.msra.mxu0 0.0
    %968 = vmatprep.subr.mxu0 0.0
    %969 = vmatpush2.xpose.msra.mxu0 0.0
    %970 = vmatprep.mubr.f32.mxu0 0.0
    %971 = vmatmul.mubr.f32.gmra.mxu0 %v902
    %v972 = vpop.f32.mrf.mxu0
    %v973 = vadd.f32 0.0, %v972
    %v974 = vpop.f32.mrf.mxu0
    %975 = vdwg.mxu0
    %v976 = vsel %vm659, %v733, 0
    %v978 = vsel %vm659, %v817, 0
    %980 = vmatprep.subr.mxu0 0.0
    %981 = vmatpush1.xpose.msra.mxu0 0.0
    %982 = vmatprep.subr.mxu0 0.0
    %983 = vmatpush1.xpose.msra.mxu0 0.0
    %984 = vmatprep.subr.mxu0 0.0
    %985 = vmatpush1.xpose.msra.mxu0 0.0
    %986 = vmatprep.subr.mxu0 0.0
    %987 = vmatpush1.xpose.msra.mxu0 0.0
    %988 = vmatprep.subr.mxu0 0.0
    %989 = vmatpush1.xpose.msra.mxu0 0.0
    %990 = vmatprep.subr.mxu0 0.0
    %991 = vmatpush1.xpose.msra.mxu0 0.0
    %992 = vmatprep.subr.mxu0 0.0
    %993 = vmatpush1.xpose.msra.mxu0 0.0
    %994 = vmatprep.subr.mxu0 0.0
    %995 = vmatpush1.xpose.msra.mxu0 0.0
    %996 = vmatprep.subr.mxu0 0.0
    %997 = vmatpush1.xpose.msra.mxu0 0.0
    %998 = vmatprep.subr.mxu0 0.0
    %999 = vmatpush1.xpose.msra.mxu0 0.0
    %1000 = vmatprep.subr.mxu0 0.0
    %1001 = vmatpush1.xpose.msra.mxu0 0.0
    %1002 = vmatprep.subr.mxu0 0.0
    %1003 = vmatpush1.xpose.msra.mxu0 0.0
    %1004 = vmatprep.subr.mxu0 0.0
    %1005 = vmatpush1.xpose.msra.mxu0 0.0
    %1006 = vmatprep.subr.mxu0 0.0
    %1007 = vmatpush1.xpose.msra.mxu0 0.0
    %1008 = vmatprep.subr.mxu0 0.0
    %1009 = vmatpush1.xpose.msra.mxu0 0.0
    %1010 = vmatprep.subr.mxu0 0.0
    %1011 = vmatpush1.xpose.msra.mxu0 %v978
    %1012 = vmatprep.subr.mxu0 0.0
    %1013 = vmatpush2.xpose.msra.mxu0 0.0
    %1014 = vmatprep.subr.mxu0 0.0
    %1015 = vmatpush2.xpose.msra.mxu0 0.0
    %1016 = vmatprep.subr.mxu0 0.0
    %1017 = vmatpush2.xpose.msra.mxu0 0.0
    %1018 = vmatprep.subr.mxu0 0.0
    %1019 = vmatpush2.xpose.msra.mxu0 0.0
    %1020 = vmatprep.subr.mxu0 0.0
    %1021 = vmatpush2.xpose.msra.mxu0 0.0
    %1022 = vmatprep.subr.mxu0 0.0
    %1023 = vmatpush2.xpose.msra.mxu0 0.0
    %1024 = vmatprep.subr.mxu0 0.0
    %1025 = vmatpush2.xpose.msra.mxu0 0.0
    %1026 = vmatprep.subr.mxu0 0.0
    %1027 = vmatpush2.xpose.msra.mxu0 0.0
    %1028 = vmatprep.subr.mxu0 0.0
    %1029 = vmatpush2.xpose.msra.mxu0 0.0
    %1030 = vmatprep.subr.mxu0 0.0
    %1031 = vmatpush2.xpose.msra.mxu0 0.0
    %1032 = vmatprep.subr.mxu0 0.0
    %1033 = vmatpush2.xpose.msra.mxu0 0.0
    %1034 = vmatprep.subr.mxu0 0.0
    %1035 = vmatpush2.xpose.msra.mxu0 0.0
    %1036 = vmatprep.subr.mxu0 0.0
    %1037 = vmatpush2.xpose.msra.mxu0 0.0
    %1038 = vmatprep.subr.mxu0 0.0
    %1039 = vmatpush2.xpose.msra.mxu0 0.0
    %1040 = vmatprep.subr.mxu0 0.0
    %1041 = vmatpush2.xpose.msra.mxu0 0.0
    %1042 = vmatprep.subr.mxu0 0.0
    %1043 = vmatpush2.xpose.msra.mxu0 0.0
    %1044 = vmatprep.mubr.f32.mxu0 0.0
    %1045 = vmatmul.mubr.f32.gmra.mxu0 %v976
    %v1046 = vpop.f32.mrf.mxu0
    %v1047 = vadd.f32 0.0, %v1046
    %v1048 = vpop.f32.mrf.mxu0
    %1049 = vdwg.mxu0
    %v1050 = vmul.f32 %v973, 0.25
    %v1051 = vmul.f32 %v1047, 0.25
    %vm1052 = vcmask 27648
    %v1053 = vsel %vm1052, %v1050, -inf
    %1054 = vmax.xlane.f32.xlu0 %v1053
    %v1055 = vpop.xlane.xlu0 %1054
    %v1056 = vsel %vm1052, %v1051, -inf
    %1057 = vmax.xlane.f32.xlu0 %v1056
    %v1058 = vpop.xlane.xlu0 %1057
    %v1059 = vsub.f32 %v1050, %v1055
    %v1060 = vsub.f32 %v1051, %v1058
    %v1061 = vmul.f32 %v1059, 1.442695
    %v1062 = vpow.pop %v1061
    %v1063 = vmul.f32 %v1060, 1.442695
    %v1064 = vpow.pop %v1063
    %v1065 = vsel %vm1052, %v1062, 0.0
    %1066 = vadd.xlane.f32.xlu0 %v1065
    %v1067 = vpop.xlane.xlu0 %1066
    %v1068 = vsel %vm1052, %v1064, 0.0
    %1069 = vadd.xlane.f32.xlu0 %v1068
    %v1070 = vpop.xlane.xlu0 %1069
    %v1071 = vrcp.pop %v1067
    %v1072 = vrcp.pop %v1070
    %v1073 = vmul.f32 %v1062, %v1071
    %v1074 = vmul.f32 %v1064, %v1072
    %vm1075 = vcmask 31744
    %v1077 = vsel %vm1075, %v1073, 0
    %vm1079 = vcmask 1043456
    %v1080 = vsel %vm1079, %v897, 0
    %1082 = vmatprep.subr.mxu0 0.0
    %1083 = vmatpush1.msra.mxu0 0.0
    %1084 = vmatprep.subr.mxu0 0.0
    %1085 = vmatpush1.msra.mxu0 0.0
    %1086 = vmatprep.subr.mxu0 0.0
    %1087 = vmatpush1.msra.mxu0 0.0
    %1088 = vmatprep.subr.mxu0 0.0
    %1089 = vmatpush1.msra.mxu0 0.0
    %1090 = vmatprep.subr.mxu0 0.0
    %1091 = vmatpush1.msra.mxu0 0.0
    %1092 = vmatprep.subr.mxu0 0.0
    %1093 = vmatpush1.msra.mxu0 0.0
    %1094 = vmatprep.subr.mxu0 0.0
    %1095 = vmatpush1.msra.mxu0 0.0
    %1096 = vmatprep.subr.mxu0 0.0
    %1097 = vmatpush1.msra.mxu0 0.0
    %1098 = vmatprep.subr.mxu0 0.0
    %1099 = vmatpush1.msra.mxu0 0.0
    %1100 = vmatprep.subr.mxu0 0.0
    %1101 = vmatpush1.msra.mxu0 0.0
    %1102 = vmatprep.subr.mxu0 0.0
    %1103 = vmatpush1.msra.mxu0 0.0
    %1104 = vmatprep.subr.mxu0 0.0
    %1105 = vmatpush1.msra.mxu0 0.0
    %1106 = vmatprep.subr.mxu0 0.0
    %1107 = vmatpush1.msra.mxu0 0.0
    %1108 = vmatprep.subr.mxu0 0.0
    %1109 = vmatpush1.msra.mxu0 0.0
    %1110 = vmatprep.subr.mxu0 0.0
    %1111 = vmatpush1.msra.mxu0 0.0
    %1112 = vmatprep.subr.mxu0 0.0
    %1113 = vmatpush1.msra.mxu0 %v1080
    %1114 = vmatprep.subr.mxu0 0.0
    %1115 = vmatpush2.msra.mxu0 0.0
    %1116 = vmatprep.subr.mxu0 0.0
    %1117 = vmatpush2.msra.mxu0 0.0
    %1118 = vmatprep.subr.mxu0 0.0
    %1119 = vmatpush2.msra.mxu0 0.0
    %1120 = vmatprep.subr.mxu0 0.0
    %1121 = vmatpush2.msra.mxu0 0.0
    %1122 = vmatprep.subr.mxu0 0.0
    %1123 = vmatpush2.msra.mxu0 0.0
    %1124 = vmatprep.subr.mxu0 0.0
    %1125 = vmatpush2.msra.mxu0 0.0
    %1126 = vmatprep.subr.mxu0 0.0
    %1127 = vmatpush2.msra.mxu0 0.0
    %1128 = vmatprep.subr.mxu0 0.0
    %1129 = vmatpush2.msra.mxu0 0.0
    %1130 = vmatprep.subr.mxu0 0.0
    %1131 = vmatpush2.msra.mxu0 0.0
    %1132 = vmatprep.subr.mxu0 0.0
    %1133 = vmatpush2.msra.mxu0 0.0
    %1134 = vmatprep.subr.mxu0 0.0
    %1135 = vmatpush2.msra.mxu0 0.0
    %1136 = vmatprep.subr.mxu0 0.0
    %1137 = vmatpush2.msra.mxu0 0.0
    %1138 = vmatprep.subr.mxu0 0.0
    %1139 = vmatpush2.msra.mxu0 0.0
    %1140 = vmatprep.subr.mxu0 0.0
    %1141 = vmatpush2.msra.mxu0 0.0
    %1142 = vmatprep.subr.mxu0 0.0
    %1143 = vmatpush2.msra.mxu0 0.0
    %1144 = vmatprep.subr.mxu0 0.0
    %1145 = vmatpush2.msra.mxu0 0.0
    %1146 = vmatprep.mubr.f32.mxu0 0.0
    %1147 = vmatmul.mubr.f32.gmra.mxu0 %v1077
    %v1148 = vpop.f32.mrf.mxu0
    %v1149 = vadd.f32 0.0, %v1148
    %v1150 = vpop.f32.mrf.mxu0
    %1151 = vdwg.mxu0
    %v1153 = vsel %vm1075, %v1074, 0
    %v1155 = vsel %vm1079, %v901, 0
    %1157 = vmatprep.subr.mxu0 0.0
    %1158 = vmatpush1.msra.mxu0 0.0
    %1159 = vmatprep.subr.mxu0 0.0
    %1160 = vmatpush1.msra.mxu0 0.0
    %1161 = vmatprep.subr.mxu0 0.0
    %1162 = vmatpush1.msra.mxu0 0.0
    %1163 = vmatprep.subr.mxu0 0.0
    %1164 = vmatpush1.msra.mxu0 0.0
    %1165 = vmatprep.subr.mxu0 0.0
    %1166 = vmatpush1.msra.mxu0 0.0
    %1167 = vmatprep.subr.mxu0 0.0
    %1168 = vmatpush1.msra.mxu0 0.0
    %1169 = vmatprep.subr.mxu0 0.0
    %1170 = vmatpush1.msra.mxu0 0.0
    %1171 = vmatprep.subr.mxu0 0.0
    %1172 = vmatpush1.msra.mxu0 0.0
    %1173 = vmatprep.subr.mxu0 0.0
    %1174 = vmatpush1.msra.mxu0 0.0
    %1175 = vmatprep.subr.mxu0 0.0
    %1176 = vmatpush1.msra.mxu0 0.0
    %1177 = vmatprep.subr.mxu0 0.0
    %1178 = vmatpush1.msra.mxu0 0.0
    %1179 = vmatprep.subr.mxu0 0.0
    %1180 = vmatpush1.msra.mxu0 0.0
    %1181 = vmatprep.subr.mxu0 0.0
    %1182 = vmatpush1.msra.mxu0 0.0
    %1183 = vmatprep.subr.mxu0 0.0
    %1184 = vmatpush1.msra.mxu0 0.0
    %1185 = vmatprep.subr.mxu0 0.0
    %1186 = vmatpush1.msra.mxu0 0.0
    %1187 = vmatprep.subr.mxu0 0.0
    %1188 = vmatpush1.msra.mxu0 %v1155
    %1189 = vmatprep.subr.mxu0 0.0
    %1190 = vmatpush2.msra.mxu0 0.0
    %1191 = vmatprep.subr.mxu0 0.0
    %1192 = vmatpush2.msra.mxu0 0.0
    %1193 = vmatprep.subr.mxu0 0.0
    %1194 = vmatpush2.msra.mxu0 0.0
    %1195 = vmatprep.subr.mxu0 0.0
    %1196 = vmatpush2.msra.mxu0 0.0
    %1197 = vmatprep.subr.mxu0 0.0
    %1198 = vmatpush2.msra.mxu0 0.0
    %1199 = vmatprep.subr.mxu0 0.0
    %1200 = vmatpush2.msra.mxu0 0.0
    %1201 = vmatprep.subr.mxu0 0.0
    %1202 = vmatpush2.msra.mxu0 0.0
    %1203 = vmatprep.subr.mxu0 0.0
    %1204 = vmatpush2.msra.mxu0 0.0
    %1205 = vmatprep.subr.mxu0 0.0
    %1206 = vmatpush2.msra.mxu0 0.0
    %1207 = vmatprep.subr.mxu0 0.0
    %1208 = vmatpush2.msra.mxu0 0.0
    %1209 = vmatprep.subr.mxu0 0.0
    %1210 = vmatpush2.msra.mxu0 0.0
    %1211 = vmatprep.subr.mxu0 0.0
    %1212 = vmatpush2.msra.mxu0 0.0
    %1213 = vmatprep.subr.mxu0 0.0
    %1214 = vmatpush2.msra.mxu0 0.0
    %1215 = vmatprep.subr.mxu0 0.0
    %1216 = vmatpush2.msra.mxu0 0.0
    %1217 = vmatprep.subr.mxu0 0.0
    %1218 = vmatpush2.msra.mxu0 0.0
    %1219 = vmatprep.subr.mxu0 0.0
    %1220 = vmatpush2.msra.mxu0 0.0
    %1221 = vmatprep.mubr.f32.mxu0 0.0
    %1222 = vmatmul.mubr.f32.gmra.mxu0 %v1153
    %v1223 = vpop.f32.mrf.mxu0
    %v1224 = vadd.f32 0.0, %v1223
    %v1225 = vpop.f32.mrf.mxu0
    %1226 = vdwg.mxu0
    %v1227 = vld [vmem:[%s35] sm:$0xff]
    %v1228 = vld [vmem:[%s35 + $0x8] sm:$0xff]
    %v1229 = vld [vmem:[%s37] sm:$0x1]
    %v1231 = vlaneseq
    %v1232 = vshrl.u32 %v1231, 7
    %v1233 = vsub.s32 0, %v1232
    %v1234 = vrot.slane %v1229, %v1233
    %v1237 = vcombine.low %v1149, %v1224
    %v1238 = vcombine.low %v1234, %v1234
    %v1240 = vsel %vm659, %v1237, 0
    %1242 = vmatprep.subr.mxu0 0.0
    %1243 = vmatpush1.msra.mxu0 0.0
    %1244 = vmatprep.subr.mxu0 0.0
    %1245 = vmatpush1.msra.mxu0 0.0
    %1246 = vmatprep.subr.mxu0 0.0
    %1247 = vmatpush1.msra.mxu0 0.0
    %1248 = vmatprep.subr.mxu0 0.0
    %1249 = vmatpush1.msra.mxu0 0.0
    %1250 = vmatprep.subr.mxu0 0.0
    %1251 = vmatpush1.msra.mxu0 0.0
    %1252 = vmatprep.subr.mxu0 0.0
    %1253 = vmatpush1.msra.mxu0 0.0
    %1254 = vmatprep.subr.mxu0 0.0
    %1255 = vmatpush1.msra.mxu0 0.0
    %1256 = vmatprep.subr.mxu0 0.0
    %1257 = vmatpush1.msra.mxu0 0.0
    %1258 = vmatprep.subr.mxu0 0.0
    %1259 = vmatpush1.msra.mxu0 0.0
    %1260 = vmatprep.subr.mxu0 0.0
    %1261 = vmatpush1.msra.mxu0 0.0
    %1262 = vmatprep.subr.mxu0 0.0
    %1263 = vmatpush1.msra.mxu0 0.0
    %1264 = vmatprep.subr.mxu0 0.0
    %1265 = vmatpush1.msra.mxu0 0.0
    %1266 = vmatprep.subr.mxu0 0.0
    %1267 = vmatpush1.msra.mxu0 0.0
    %1268 = vmatprep.subr.mxu0 0.0
    %1269 = vmatpush1.msra.mxu0 0.0
    %1270 = vmatprep.subr.mxu0 0.0
    %1271 = vmatpush1.msra.mxu0 %v1228
    %1272 = vmatprep.subr.mxu0 0.0
    %1273 = vmatpush1.msra.mxu0 %v1227
    %1274 = vmatprep.subr.mxu0 0.0
    %1275 = vmatpush2.msra.mxu0 0.0
    %1276 = vmatprep.subr.mxu0 0.0
    %1277 = vmatpush2.msra.mxu0 0.0
    %1278 = vmatprep.subr.mxu0 0.0
    %1279 = vmatpush2.msra.mxu0 0.0
    %1280 = vmatprep.subr.mxu0 0.0
    %1281 = vmatpush2.msra.mxu0 0.0
    %1282 = vmatprep.subr.mxu0 0.0
    %1283 = vmatpush2.msra.mxu0 0.0
    %1284 = vmatprep.subr.mxu0 0.0
    %1285 = vmatpush2.msra.mxu0 0.0
    %1286 = vmatprep.subr.mxu0 0.0
    %1287 = vmatpush2.msra.mxu0 0.0
    %1288 = vmatprep.subr.mxu0 0.0
    %1289 = vmatpush2.msra.mxu0 0.0
    %1290 = vmatprep.subr.mxu0 0.0
    %1291 = vmatpush2.msra.mxu0 0.0
    %1292 = vmatprep.subr.mxu0 0.0
    %1293 = vmatpush2.msra.mxu0 0.0
    %1294 = vmatprep.subr.mxu0 0.0
    %1295 = vmatpush2.msra.mxu0 0.0
    %1296 = vmatprep.subr.mxu0 0.0
    %1297 = vmatpush2.msra.mxu0 0.0
    %1298 = vmatprep.subr.mxu0 0.0
    %1299 = vmatpush2.msra.mxu0 0.0
    %1300 = vmatprep.subr.mxu0 0.0
    %1301 = vmatpush2.msra.mxu0 0.0
    %1302 = vmatprep.subr.mxu0 0.0
    %1303 = vmatpush2.msra.mxu0 0.0
    %1304 = vmatprep.subr.mxu0 0.0
    %1305 = vmatpush2.msra.mxu0 0.0
    %1306 = vmatprep.mubr.f32.mxu0 0.0
    %1307 = vmatmul.mubr.f32.gmra.mxu0 %v1240
    %v1308 = vpop.f32.mrf.mxu0
    %v1309 = vadd.f32 %v1238, %v1308
    %v1310 = vpop.f32.mrf.mxu0
    %1311 = vdwg.mxu0
    %v1313 = vcombine.high %v1309, %v1309
    %v1315 = vadd.f32 %v644, %v1309
    %v1316 = vadd.f32 %v645, %v1313
    %v1317 = vld [vmem:[%s39] sm:$0x1]
    %v1318 = vld [vmem:[%s41] sm:$0x1]
    %vm1319 = vcmask 125952
    %v1320 = vsel %vm1319, %v1315, 0.0
    %1321 = vadd.xlane.f32.xlu0 %v1320
    %v1322 = vpop.xlane.xlu0 %1321
    %v1323 = vsel %vm1319, %v1316, 0.0
    %1324 = vadd.xlane.f32.xlu0 %v1323
    %v1325 = vpop.xlane.xlu0 %1324
    %v1326 = vrcp.pop 16.0
    %v1327 = vmul.f32 %v1322, %v1326
    %v1328 = vmul.f32 %v1325, %v1326
    %v1329 = vsub.f32 %v1315, %v1327
    %v1330 = vsub.f32 %v1316, %v1328
    %v1331 = vmul.f32 %v1329, %v1329
    %v1332 = vmul.f32 %v1330, %v1330
    %v1333 = vsel %vm1319, %v1331, 0.0
    %1334 = vadd.xlane.f32.xlu0 %v1333
    %v1335 = vpop.xlane.xlu0 %1334
    %v1336 = vsel %vm1319, %v1332, 0.0
    %1337 = vadd.xlane.f32.xlu0 %v1336
    %v1338 = vpop.xlane.xlu0 %1337
    %v1339 = vmul.f32 %v1335, %v1326
    %v1340 = vmul.f32 %v1338, %v1326
    %v1341 = vadd.f32 %v1339, 1e-05
    %v1342 = vadd.f32 %v1340, 1e-05
    %v1343 = vrsqrt.pop %v1341
    %v1344 = vrsqrt.pop %v1342
    %v1345 = vmul.f32 %v1329, %v1343
    %v1346 = vmul.f32 %v1330, %v1344
    %v1348 = vlaneseq
    %v1349 = vshrl.u32 %v1348, 7
    %v1350 = vsub.s32 0, %v1349
    %v1351 = vrot.slane %v1317, %v1350
    %v1353 = vmul.f32 %v1345, %v1351
    %v1354 = vmul.f32 %v1346, %v1351
    %v1356 = vlaneseq
    %v1357 = vshrl.u32 %v1356, 7
    %v1358 = vsub.s32 0, %v1357
    %v1359 = vrot.slane %v1318, %v1358
    %v1361 = vadd.f32 %v1353, %v1359
    %v1362 = vadd.f32 %v1354, %v1359
    %v1363 = vld [vmem:[%s43] sm:$0xff]
    %v1364 = vld [vmem:[%s43 + $0x8] sm:$0xff]
    %v1365 = vld [vmem:[%s45] sm:$0x1]
    %v1367 = vlaneseq
    %v1368 = vshrl.u32 %v1367, 7
    %v1369 = vsub.s32 0, %v1368
    %v1370 = vrot.slane %v1365, %v1369
    %v1373 = vcombine.low %v1361, %v1362
    %v1374 = vcombine.low %v1370, %v1370
    %v1376 = vsel %vm659, %v1373, 0
    %1378 = vmatprep.subr.mxu0 0.0
    %1379 = vmatpush1.msra.mxu0 0.0
    %1380 = vmatprep.subr.mxu0 0.0
    %1381 = vmatpush1.msra.mxu0 0.0
    %1382 = vmatprep.subr.mxu0 0.0
    %1383 = vmatpush1.msra.mxu0 0.0
    %1384 = vmatprep.subr.mxu0 0.0
    %1385 = vmatpush1.msra.mxu0 0.0
    %1386 = vmatprep.subr.mxu0 0.0
    %1387 = vmatpush1.msra.mxu0 0.0
    %1388 = vmatprep.subr.mxu0 0.0
    %1389 = vmatpush1.msra.mxu0 0.0
    %1390 = vmatprep.subr.mxu0 0.0
    %1391 = vmatpush1.msra.mxu0 0.0
    %1392 = vmatprep.subr.mxu0 0.0
    %1393 = vmatpush1.msra.mxu0 0.0
    %1394 = vmatprep.subr.mxu0 0.0
    %1395 = vmatpush1.msra.mxu0 0.0
    %1396 = vmatprep.subr.mxu0 0.0
    %1397 = vmatpush1.msra.mxu0 0.0
    %1398 = vmatprep.subr.mxu0 0.0
    %1399 = vmatpush1.msra.mxu0 0.0
    %1400 = vmatprep.subr.mxu0 0.0
    %1401 = vmatpush1.msra.mxu0 0.0
    %1402 = vmatprep.subr.mxu0 0.0
    %1403 = vmatpush1.msra.mxu0 0.0
    %1404 = vmatprep.subr.mxu0 0.0
    %1405 = vmatpush1.msra.mxu0 0.0
    %1406 = vmatprep.subr.mxu0 0.0
    %1407 = vmatpush1.msra.mxu0 %v1364
    %1408 = vmatprep.subr.mxu0 0.0
    %1409 = vmatpush1.msra.mxu0 %v1363
    %1410 = vmatprep.subr.mxu0 0.0
    %1411 = vmatpush2.msra.mxu0 0.0
    %1412 = vmatprep.subr.mxu0 0.0
    %1413 = vmatpush2.msra.mxu0 0.0
    %1414 = vmatprep.subr.mxu0 0.0
    %1415 = vmatpush2.msra.mxu0 0.0
    %1416 = vmatprep.subr.mxu0 0.0
    %1417 = vmatpush2.msra.mxu0 0.0
    %1418 = vmatprep.subr.mxu0 0.0
    %1419 = vmatpush2.msra.mxu0 0.0
    %1420 = vmatprep.subr.mxu0 0.0
    %1421 = vmatpush2.msra.mxu0 0.0
    %1422 = vmatprep.subr.mxu0 0.0
    %1423 = vmatpush2.msra.mxu0 0.0
    %1424 = vmatprep.subr.mxu0 0.0
    %1425 = vmatpush2.msra.mxu0 0.0
    %1426 = vmatprep.subr.mxu0 0.0
    %1427 = vmatpush2.msra.mxu0 0.0
    %1428 = vmatprep.subr.mxu0 0.0
    %1429 = vmatpush2.msra.mxu0 0.0
    %1430 = vmatprep.subr.mxu0 0.0
    %1431 = vmatpush2.msra.mxu0 0.0
    %1432 = vmatprep.subr.mxu0 0.0
    %1433 = vmatpush2.msra.mxu0 0.0
    %1434 = vmatprep.subr.mxu0 0.0
    %1435 = vmatpush2.msra.mxu0 0.0
    %1436 = vmatprep.subr.mxu0 0.0
    %1437 = vmatpush2.msra.mxu0 0.0
    %1438 = vmatprep.subr.mxu0 0.0
    %1439 = vmatpush2.msra.mxu0 0.0
    %1440 = vmatprep.subr.mxu0 0.0
    %1441 = vmatpush2.msra.mxu0 0.0
    %1442 = vmatprep.mubr.f32.mxu0 0.0
    %1443 = vmatmul.mubr.f32.gmra.mxu0 %v1376
    %v1444 = vpop.f32.mrf.mxu0
    %v1445 = vadd.f32 %v1374, %v1444
    %v1446 = vpop.f32.mrf.mxu0
    %1447 = vdwg.mxu0
    %v1449 = vcombine.high %v1445, %v1445
    %v1451 = vmax.f32 %v1445, 0.0
    %v1452 = vmax.f32 %v1449, 0.0
    %v1453 = vld [vmem:[%s47] sm:$0xff]
    %v1454 = vld [vmem:[%s47 + $0x8] sm:$0xff]
    %v1455 = vld [vmem:[%s47 + $0x10] sm:$0xff]
    %v1456 = vld [vmem:[%s47 + $0x18] sm:$0xff]
    %v1457 = vld [vmem:[%s49] sm:$0x1]
    %v1459 = vlaneseq
    %v1460 = vshrl.u32 %v1459, 7
    %v1461 = vsub.s32 0, %v1460
    %v1462 = vrot.slane %v1457, %v1461
    %v1465 = vcombine.low %v1451, %v1452
    %v1466 = vcombine.low %v1462, %v1462
    %v1468 = vsel %vm225, %v1465, 0
    %1470 = vmatprep.subr.mxu0 0.0
    %1471 = vmatpush1.msra.mxu0 0.0
    %1472 = vmatprep.subr.mxu0 0.0
    %1473 = vmatpush1.msra.mxu0 0.0
    %1474 = vmatprep.subr.mxu0 0.0
    %1475 = vmatpush1.msra.mxu0 0.0
    %1476 = vmatprep.subr.mxu0 0.0
    %1477 = vmatpush1.msra.mxu0 0.0
    %1478 = vmatprep.subr.mxu0 0.0
    %1479 = vmatpush1.msra.mxu0 0.0
    %1480 = vmatprep.subr.mxu0 0.0
    %1481 = vmatpush1.msra.mxu0 0.0
    %1482 = vmatprep.subr.mxu0 0.0
    %1483 = vmatpush1.msra.mxu0 0.0
    %1484 = vmatprep.subr.mxu0 0.0
    %1485 = vmatpush1.msra.mxu0 0.0
    %1486 = vmatprep.subr.mxu0 0.0
    %1487 = vmatpush1.msra.mxu0 0.0
    %1488 = vmatprep.subr.mxu0 0.0
    %1489 = vmatpush1.msra.mxu0 0.0
    %1490 = vmatprep.subr.mxu0 0.0
    %1491 = vmatpush1.msra.mxu0 0.0
    %1492 = vmatprep.subr.mxu0 0.0
    %1493 = vmatpush1.msra.mxu0 0.0
    %1494 = vmatprep.subr.mxu0 0.0
    %1495 = vmatpush1.msra.mxu0 %v1456
    %1496 = vmatprep.subr.mxu0 0.0
    %1497 = vmatpush1.msra.mxu0 %v1455
    %1498 = vmatprep.subr.mxu0 0.0
    %1499 = vmatpush1.msra.mxu0 %v1454
    %1500 = vmatprep.subr.mxu0 0.0
    %1501 = vmatpush1.msra.mxu0 %v1453
    %1502 = vmatprep.subr.mxu0 0.0
    %1503 = vmatpush2.msra.mxu0 0.0
    %1504 = vmatprep.subr.mxu0 0.0
    %1505 = vmatpush2.msra.mxu0 0.0
    %1506 = vmatprep.subr.mxu0 0.0
    %1507 = vmatpush2.msra.mxu0 0.0
    %1508 = vmatprep.subr.mxu0 0.0
    %1509 = vmatpush2.msra.mxu0 0.0
    %1510 = vmatprep.subr.mxu0 0.0
    %1511 = vmatpush2.msra.mxu0 0.0
    %1512 = vmatprep.subr.mxu0 0.0
    %1513 = vmatpush2.msra.mxu0 0.0
    %1514 = vmatprep.subr.mxu0 0.0
    %1515 = vmatpush2.msra.mxu0 0.0
    %1516 = vmatprep.subr.mxu0 0.0
    %1517 = vmatpush2.msra.mxu0 0.0
    %1518 = vmatprep.subr.mxu0 0.0
    %1519 = vmatpush2.msra.mxu0 0.0
    %1520 = vmatprep.subr.mxu0 0.0
    %1521 = vmatpush2.msra.mxu0 0.0
    %1522 = vmatprep.subr.mxu0 0.0
    %1523 = vmatpush2.msra.mxu0 0.0
    %1524 = vmatprep.subr.mxu0 0.0
    %1525 = vmatpush2.msra.mxu0 0.0
    %1526 = vmatprep.subr.mxu0 0.0
    %1527 = vmatpush2.msra.mxu0 0.0
    %1528 = vmatprep.subr.mxu0 0.0
    %1529 = vmatpush2.msra.mxu0 0.0
    %1530 = vmatprep.subr.mxu0 0.0
    %1531 = vmatpush2.msra.mxu0 0.0
    %1532 = vmatprep.subr.mxu0 0.0
    %1533 = vmatpush2.msra.mxu0 0.0
    %1534 = vmatprep.mubr.f32.mxu0 0.0
    %1535 = vmatmul.mubr.f32.gmra.mxu0 %v1468
    %v1536 = vpop.f32.mrf.mxu0
    %v1537 = vadd.f32 %v1466, %v1536
    %v1538 = vpop.f32.mrf.mxu0
    %1539 = vdwg.mxu0
    %v1541 = vcombine.high %v1537, %v1537
    %v1543 = vadd.f32 %v1361, %v1537
    %v1544 = vadd.f32 %v1362, %v1541
    %v1545 = vld [vmem:[%s51] sm:$0x1]
    %v1546 = vld [vmem:[%s53] sm:$0x1]
    %v1547 = vsel %vm1319, %v1543, 0.0
    %1548 = vadd.xlane.f32.xlu0 %v1547
    %v1549 = vpop.xlane.xlu0 %1548
    %v1550 = vsel %vm1319, %v1544, 0.0
    %1551 = vadd.xlane.f32.xlu0 %v1550
    %v1552 = vpop.xlane.xlu0 %1551
    %v1553 = vmul.f32 %v1549, %v1326
    %v1554 = vmul.f32 %v1552, %v1326
    %v1555 = vsub.f32 %v1543, %v1553
    %v1556 = vsub.f32 %v1544, %v1554
    %v1557 = vmul.f32 %v1555, %v1555
    %v1558 = vmul.f32 %v1556, %v1556
    %v1559 = vsel %vm1319, %v1557, 0.0
    %1560 = vadd.xlane.f32.xlu0 %v1559
    %v1561 = vpop.xlane.xlu0 %1560
    %v1562 = vsel %vm1319, %v1558, 0.0
    %1563 = vadd.xlane.f32.xlu0 %v1562
    %v1564 = vpop.xlane.xlu0 %1563
    %v1565 = vmul.f32 %v1561, %v1326
    %v1566 = vmul.f32 %v1564, %v1326
    %v1567 = vadd.f32 %v1565, 1e-05
    %v1568 = vadd.f32 %v1566, 1e-05
    %v1569 = vrsqrt.pop %v1567
    %v1570 = vrsqrt.pop %v1568
    %v1571 = vmul.f32 %v1555, %v1569
    %v1572 = vmul.f32 %v1556, %v1570
    %v1574 = vlaneseq
    %v1575 = vshrl.u32 %v1574, 7
    %v1576 = vsub.s32 0, %v1575
    %v1577 = vrot.slane %v1545, %v1576
    %v1579 = vmul.f32 %v1571, %v1577
    %v1580 = vmul.f32 %v1572, %v1577
    %v1582 = vlaneseq
    %v1583 = vshrl.u32 %v1582, 7
    %v1584 = vsub.s32 0, %v1583
    %v1585 = vrot.slane %v1546, %v1584
    %v1587 = vadd.f32 %v1579, %v1585
    %v1588 = vadd.f32 %v1580, %v1585
    %v1589 = vld [vmem:[%s55] sm:$0xf]
    %v1590 = vld [vmem:[%s57] sm:$0xf]
    %v1591 = vsub.f32 1.0, %v1589
    %v1592 = vmul.f32 %v1590, %v1587
    %v1593 = vmul.f32 %v1590, %v1588
    %v1594 = vxor.u32 %v1592, 2147483648
    %v1595 = vxor.u32 %v1593, 2147483648
    %v1596 = vmul.f32 %v1594, 1.442695
    %v1597 = vpow.pop %v1596
    %v1598 = vmul.f32 %v1595, 1.442695
    %v1599 = vpow.pop %v1598
    %v1600 = vadd.f32 %v1597, 1.0
    %v1601 = vadd.f32 %v1599, 1.0
    %v1602 = vrcp.pop %v1600
    %v1603 = vmul.f32 1.0, %v1602
    %v1604 = vrcp.pop %v1601
    %v1605 = vmul.f32 1.0, %v1604
    %v1606 = vmul.f32 %v1591, %v1603
    %v1607 = vmul.f32 %v1591, %v1605
    %v1608 = vadd.f32 %v1589, %v1606
    %v1609 = vadd.f32 %v1589, %v1607
    %v1610 = vmul.f32 %v1608, %v1587
    %v1612 = vunpack.c.l.s4 1983009808
    %v1613 = vunpack.c.0.s8 %v1612
    %v1614 = vlaneseq
    %v1615 = vshrl.u32 %v1614, 7
    %v1616 = vsub.s32 %v1613, %v1615
    %v1617 = vrot.slane %v1610, %v1616
    %v1618 = vmul.f32 %v1609, %v1588
    %v1620 = vunpack.c.l.s4 1983009808
    %v1621 = vunpack.c.0.s8 %v1620
    %v1622 = vlaneseq
    %v1623 = vshrl.u32 %v1622, 7
    %v1624 = vsub.s32 %v1621, %v1623
    %v1625 = vrot.slane %v1618, %v1624
    %v1626 = vcombine.low %v1617, %v1625
    %v1627 = vcombine.high %v1617, %v1625
    %v1629 = vunpack.c.l.s4 1934713408
    %v1630 = vunpack.c.0.s8 %v1629
    %v1631 = vlaneseq
    %v1632 = vshrl.u32 %v1631, 7
    %v1633 = vsub.s32 %v1630, %v1632
    %v1634 = vrot.slane %v1626, %v1633
    %v1636 = vunpack.c.l.s4 1934713408
    %v1637 = vunpack.c.0.s8 %v1636
    %v1638 = vlaneseq
    %v1639 = vshrl.u32 %v1638, 7
    %v1640 = vsub.s32 %v1637, %v1639
    %v1641 = vrot.slane %v1627, %v1640
    %v1642 = vcombine.high %v1634, 0.0
    %v1643 = vcombine.high %v1641, 0.0
    %1645 = vrot.lane.b32.xlu0 %v1642, 16
    %v1646 = vpop.permute.xlu0 %1645
    %1649 = vrot.lane.b32.xlu0 %v1641, 32
    %v1650 = vpop.permute.xlu0 %1649
    %1653 = vrot.lane.b32.xlu0 %v1643, 48
    %v1654 = vpop.permute.xlu0 %1653
    %v1656 = vsel %vm659, %v1634, %v1646
    %v1657 = vsel %vm225, %v1656, %v1650
    %vm1658 = vcmask 392192
    %v1659 = vsel %vm1658, %v1657, %v1654
    %v1660 = vld [vmem:[%s59] sm:$0xff]
    %v1661 = vld [vmem:[%s59 + $0x8] sm:$0xff]
    %v1662 = vld [vmem:[%s59 + $0x10] sm:$0xff]
    %v1663 = vld [vmem:[%s59 + $0x18] sm:$0xff]
    %v1664 = vld [vmem:[%s59 + $0x20] sm:$0xff]
    %v1665 = vld [vmem:[%s59 + $0x28] sm:$0xff]
    %v1666 = vld [vmem:[%s59 + $0x30] sm:$0xff]
    %v1667 = vld [vmem:[%s59 + $0x38] sm:$0xff]
    %v1668 = vld [vmem:[%s61] sm:$0x1]
    %v1670 = vlaneseq
    %v1671 = vshrl.u32 %v1670, 7
    %v1672 = vsub.s32 0, %v1671
    %v1673 = vrot.slane %v1668, %v1672
    %vm1675 = vcmask 523264
    %v1677 = vsel %vm1675, %v1659, 0
    %1679 = vmatprep.subr.mxu0 0.0
    %1680 = vmatpush1.msra.mxu0 0.0
    %1681 = vmatprep.subr.mxu0 0.0
    %1682 = vmatpush1.msra.mxu0 0.0
    %1683 = vmatprep.subr.mxu0 0.0
    %1684 = vmatpush1.msra.mxu0 0.0
    %1685 = vmatprep.subr.mxu0 0.0
    %1686 = vmatpush1.msra.mxu0 0.0
    %1687 = vmatprep.subr.mxu0 0.0
    %1688 = vmatpush1.msra.mxu0 0.0
    %1689 = vmatprep.subr.mxu0 0.0
    %1690 = vmatpush1.msra.mxu0 0.0
    %1691 = vmatprep.subr.mxu0 0.0
    %1692 = vmatpush1.msra.mxu0 0.0
    %1693 = vmatprep.subr.mxu0 0.0
    %1694 = vmatpush1.msra.mxu0 0.0
    %1695 = vmatprep.subr.mxu0 0.0
    %1696 = vmatpush1.msra.mxu0 %v1667
    %1697 = vmatprep.subr.mxu0 0.0
    %1698 = vmatpush1.msra.mxu0 %v1666
    %1699 = vmatprep.subr.mxu0 0.0
    %1700 = vmatpush1.msra.mxu0 %v1665
    %1701 = vmatprep.subr.mxu0 0.0
    %1702 = vmatpush1.msra.mxu0 %v1664
    %1703 = vmatprep.subr.mxu0 0.0
    %1704 = vmatpush1.msra.mxu0 %v1663
    %1705 = vmatprep.subr.mxu0 0.0
    %1706 = vmatpush1.msra.mxu0 %v1662
    %1707 = vmatprep.subr.mxu0 0.0
    %1708 = vmatpush1.msra.mxu0 %v1661
    %1709 = vmatprep.subr.mxu0 0.0
    %1710 = vmatpush1.msra.mxu0 %v1660
    %1711 = vmatprep.subr.mxu0 0.0
    %1712 = vmatpush2.msra.mxu0 0.0
    %1713 = vmatprep.subr.mxu0 0.0
    %1714 = vmatpush2.msra.mxu0 0.0
    %1715 = vmatprep.subr.mxu0 0.0
    %1716 = vmatpush2.msra.mxu0 0.0
    %1717 = vmatprep.subr.mxu0 0.0
    %1718 = vmatpush2.msra.mxu0 0.0
    %1719 = vmatprep.subr.mxu0 0.0
    %1720 = vmatpush2.msra.mxu0 0.0
    %1721 = vmatprep.subr.mxu0 0.0
    %1722 = vmatpush2.msra.mxu0 0.0
    %1723 = vmatprep.subr.mxu0 0.0
    %1724 = vmatpush2.msra.mxu0 0.0
    %1725 = vmatprep.subr.mxu0 0.0
    %1726 = vmatpush2.msra.mxu0 0.0
    %1727 = vmatprep.subr.mxu0 0.0
    %1728 = vmatpush2.msra.mxu0 0.0
    %1729 = vmatprep.subr.mxu0 0.0
    %1730 = vmatpush2.msra.mxu0 0.0
    %1731 = vmatprep.subr.mxu0 0.0
    %1732 = vmatpush2.msra.mxu0 0.0
    %1733 = vmatprep.subr.mxu0 0.0
    %1734 = vmatpush2.msra.mxu0 0.0
    %1735 = vmatprep.subr.mxu0 0.0
    %1736 = vmatpush2.msra.mxu0 0.0
    %1737 = vmatprep.subr.mxu0 0.0
    %1738 = vmatpush2.msra.mxu0 0.0
    %1739 = vmatprep.subr.mxu0 0.0
    %1740 = vmatpush2.msra.mxu0 0.0
    %1741 = vmatprep.subr.mxu0 0.0
    %1742 = vmatpush2.msra.mxu0 0.0
    %1743 = vmatprep.mubr.f32.mxu0 0.0
    %1744 = vmatmul.mubr.f32.gmra.mxu0 %v1677
    %v1745 = vpop.f32.mrf.mxu0
    %v1746 = vadd.f32 %v1673, %v1745
    %v1747 = vpop.f32.mrf.mxu0
    %1748 = vdwg.mxu0
    %vm1749 = vcmask 123904
    %1750 = vst.msk [vmem:[#allocation2] sm:$0x3] %vm1749, %v1746
    // Predicated region
    $region126: #{fwd.1} parent=1 // pred_check
      _
    $region127: #{fwd.1} parent=1 // pred_check_branch
      %1752 = sbr.rel (0) target = $region129
    $region128: #{fwd.1} parent=1 // pred_region
      %s1754 = ssub.s32 32, 32
      %1755 = vsyncadd [#allocation3], %s1754
      %s1757 = sshll.u32 [#allocation2], 4
      %s1758 = int_to_ptr.vmem [resolvable:$true] %s1757
      %1760 = dma.vmem_to_hbm [thread:$0]  %s1758, 32, %s63, [#allocation3]
    $region129: #{fwd.1} parent=1 // pred_fallthru
      _
    // Predicated region
    $region130: #{fwd.1} parent=1 // pred_check
      _
    $region131: #{fwd.1} parent=1 // pred_check_branch
      %1762 = sbr.rel (0) target = $region133
    $region132: #{fwd.1} parent=1 // pred_region
      %1763 = dma.done [#allocation3], 32
    $region133: #{fwd.1} parent=1 // pred_fallthru
      _
    %1764 = vsyncpa [#allocation3], 1

</llo_original>
